<compile_context>
chip_gen: v7x
topology: tpu7x:2x2x1
jax: 0.10.0
libtpu: 0.0.40
codegen_flags: <defaults>
</compile_context>

<pallas_src>
import functools

import numpy as np

import jax
import jax.numpy as jnp
from jax import lax
from jax.experimental import pallas as pl
from jax.experimental.pallas import tpu as pltpu


# --------------------------------------------------------------------------
# Compile-time constant matrices (NumPy; baked into the jitted graph once)
# --------------------------------------------------------------------------
def _pool_shift_matrix(B, S, L1, shrink, shift):
    """(B*S, B*L1): column b*L1+lo averages y1 lanes of pooled pos lo+shift (0 if OOB).

    Folds AvgPool1d(shrink) and conv2's shifted tap (zero padding at segment
    edges) into one constant matmul operand: (y1 @ M)[c, b*L1+lo] equals the
    pooled conv1 activation at position lo+shift of batch b (0 when OOB).
    """
    m = np.zeros((B * S, B * L1), np.float32)
    inv = 1.0 / shrink
    for b in range(B):
        for lo in range(L1):
            src = lo + shift
            if 0 <= src < L1:
                g0 = b * S + shrink * src
                m[g0:g0 + shrink, b * L1 + lo] = inv
    return m


def _pool2_select_matrix(B, L1, L2, shrink):
    """(L2*B, B*L1): row lo*B+b averages y2 lanes [b*L1+shrink*lo, +shrink).

    (lo-major, b-minor) row order so the channel-major PyTorch flatten becomes
    L2 contiguous static-slice copies in the kernel.  The pool2 tail drop
    (L1 % shrink) is implicit (only lo < L2 rows exist).
    """
    m = np.zeros((L2 * B, B * L1), np.float32)
    inv = 1.0 / shrink
    for lo in range(L2):
        for b in range(B):
            g0 = b * L1 + shrink * lo
            m[lo * B + b, g0:g0 + shrink] = inv
    return m


# --------------------------------------------------------------------------
# Fused Actor forward kernel (gridless; everything stays in VMEM / vregs)
# --------------------------------------------------------------------------
def _actor_fused_kernel(B, S, A, shrink,
                        x_ref,              # (3*Cin, B*S)  im2col input (transposed trunk)
                        w1c_ref, b1c_ref,   # (C1, 3*Cin), (C1, 1)
                        p1s_ref,            # (3, B*S, B*L1)  pool1 + conv2-shift constants
                        w2c_ref, b2c_ref,   # (3, C2, C1), (C2, 1)
                        p2sel_ref,          # (L2*B, B*L1)    pool2 selection constant
                        w1l_ref, b1l_ref,   # (L2*C2, H) mm, (1, H)
                        w2l_ref, b2l_ref,   # (H, H) mm,     (1, H)
                        w3l_ref, b3l_ref,   # (H, A*SP) mm,  (1, A*SP)
                        act_ref,            # (B, SP)   f32 out
                        logit_ref,          # (B, A*SP) f32 out (lane-dense)
                        flat_ref):          # scratch (B, L2*C2) f32
    f32 = jnp.float32
    L1 = S // shrink
    L2 = L1 // shrink
    SP = act_ref.shape[-1]
    C2 = w2c_ref.shape[1]
    mm = w1l_ref.dtype            # bf16 (default, all gens) or f32 (exactness tests)

    # ---- conv1 + ReLU: single im2col matmul, channels in sublanes, B*S lanes
    y1 = jnp.dot(w1c_ref[...], x_ref[...], preferred_element_type=f32) + b1c_ref[...]
    y1 = jnp.maximum(y1, 0.0)                                       # (C1, B*S)

    # ---- pool1 (+ conv2's -1/0/+1 taps folded into constant matrices) + conv2 + ReLU
    acc2 = None
    for k in range(3):
        p1k = jnp.dot(y1, p1s_ref[k], preferred_element_type=f32)   # (C1, B*L1)
        t = jnp.dot(w2c_ref[k], p1k, preferred_element_type=f32)    # (C2, B*L1)
        acc2 = t if acc2 is None else acc2 + t
    y2 = jnp.maximum(acc2 + b2c_ref[...], 0.0)                      # (C2, B*L1)

    # ---- pool2 as ONE selection matmul (NT form: contract the lane dims) ----
    q_t = lax.dot_general(p2sel_ref[...], y2,
                          dimension_numbers=(((1,), (1,)), ((), ())),
                          preferred_element_type=f32)               # (L2*B, C2)

    # ---- PyTorch channel-major flatten -> lane-dense (B, L2*C2) slab --------
    # L2 cheap static-slice copies through VMEM scratch (no per-position matmuls).
    for lo in range(L2):
        flat_ref[:, lo * C2:(lo + 1) * C2] = q_t[lo * B:(lo + 1) * B, :]
    flat = flat_ref[...].astype(mm)                                 # (B, L2*C2)

    # ---- linear1..3 (single wide matmuls, bf16 inputs / f32 accumulation) ---
    h1 = jnp.dot(flat, w1l_ref[...], preferred_element_type=f32) + b1l_ref[...]
    h1 = jnp.maximum(h1, 0.0)                                       # (B, H)
    h2 = jnp.dot(h1.astype(mm), w2l_ref[...], preferred_element_type=f32) + b2l_ref[...]
    h2 = jnp.maximum(h2, 0.0)                                       # (B, H)
    z = jnp.dot(h2.astype(mm), w3l_ref[...], preferred_element_type=f32) + b3l_ref[...]
    logit_ref[...] = z                                              # (B, A*SP) lane-dense store

    # ---- softmax over action dim, argmax over length dim, one-hot -----------
    za = [z[:, a * SP:(a + 1) * SP] for a in range(A)]              # 128-aligned static slices
    m = za[0]
    for a in range(1, A):
        m = jnp.maximum(m, za[a])
    es = [jnp.exp(v - m) for v in za]
    den = es[0]
    for a in range(1, A):
        den = den + es[a]
    rec = pl.reciprocal(den, approx=False)      # exact -> argmax ties stay stable

    s_iota = lax.broadcasted_iota(jnp.int32, (B, SP), 1)
    valid = s_iota < S                          # mask the lane padding
    onehot = jnp.zeros((B, SP), jnp.bool_)
    for a in range(A):
        pa = jnp.where(valid, es[a] * rec, f32(-1.0))   # pad lanes can never win
        pmax = jnp.max(pa, axis=-1, keepdims=True)
        idx = jnp.min(jnp.where(pa >= pmax, s_iota, SP), axis=-1, keepdims=True)
        onehot = onehot | (s_iota == idx)
    act_ref[...] = jnp.where(onehot, f32(1.0), f32(0.0))


# --------------------------------------------------------------------------
# One-time weight preparation (hoisted out of the per-step path; cache this)
# --------------------------------------------------------------------------
def prepare_actor_params(params, state_len, action_dim=2, shrink_dim=4,
                         use_bf16_mlp=True):
    """Reformat PyTorch-layout weights for the fused kernel. Run once, reuse."""
    S, A, shrink = state_len, action_dim, shrink_dim
    L1 = S // shrink
    L2 = L1 // shrink
    SP = ((S + 127) // 128) * 128
    C1, Cin, _ = params['conv1_w'].shape
    C2 = params['conv2_w'].shape[0]
    H = params['lin1_w'].shape[0]
    mm = jnp.bfloat16 if use_bf16_mlp else jnp.float32

    # conv1 as one im2col matmul: column order k*Cin + i
    w1c = jnp.transpose(params['conv1_w'], (0, 2, 1)).reshape(C1, 3 * Cin)
    b1c = params['conv1_b'].reshape(C1, 1)
    # conv2 per-tap weights
    w2c = jnp.transpose(params['conv2_w'], (2, 0, 1))               # (3, C2, C1)
    b2c = params['conv2_b'].reshape(C2, 1)
    # linear1 with the channel-major flatten absorbed; K order = (lo, c)
    w1l = jnp.transpose(params['lin1_w'].reshape(H, C2, L2),
                        (2, 1, 0)).reshape(L2 * C2, H).astype(mm)
    b1l = params['lin1_b'].reshape(1, H)
    w2l = params['lin2_w'].T.astype(mm)
    b2l = params['lin2_b'].reshape(1, H)
    # linear3 fused across actions, zero-padded per-action to the 128-lane tile
    w3 = jnp.pad(params['lin3_w'].reshape(A, S, H), ((0, 0), (0, SP - S), (0, 0)))
    w3l = jnp.transpose(w3, (2, 0, 1)).reshape(H, A * SP).astype(mm)
    b3l = jnp.pad(params['lin3_b'].reshape(A, S), ((0, 0), (0, SP - S))).reshape(1, A * SP)

    return dict(w1c=w1c, b1c=b1c, w2c=w2c, b2c=b2c,
                w1l=w1l, b1l=b1l, w2l=w2l, b2l=b2l, w3l=w3l, b3l=b3l)


# --------------------------------------------------------------------------
# Wrapper: full Actor.forward (one pallas_call)
# --------------------------------------------------------------------------
def actor_forward(prepped, state, action_dim=2, shrink_dim=4):
    """state: (B, state_dim, state_len) -- NCW, exactly like the PyTorch module."""
    B, Cin, S = state.shape
    A, shrink = action_dim, shrink_dim
    L1 = S // shrink
    L2 = L1 // shrink
    SP = ((S + 127) // 128) * 128
    C2 = prepped['w2c'].shape[1]

    # --- only per-step XLA glue on the live input: one small fused im2col ----
    # (transposed trunk layout: row k*Cin+i, column b*S+l)
    xp = jnp.pad(state, ((0, 0), (0, 0), (1, 1)))                    # (B, Cin, S+2)
    x_im2col = jnp.concatenate([xp[:, :, k:k + S] for k in range(3)], axis=1)
    x_im2col = jnp.transpose(x_im2col, (1, 0, 2)).reshape(3 * Cin, B * S)

    # --- compile-time constant pooling / selection matrices (NumPy -> baked) -
    p1s = jnp.asarray(np.stack([_pool_shift_matrix(B, S, L1, shrink, d)
                                for d in (-1, 0, 1)]))               # (3, B*S, B*L1)
    p2sel = jnp.asarray(_pool2_select_matrix(B, L1, L2, shrink))     # (L2*B, B*L1)

    kernel = functools.partial(_actor_fused_kernel, B, S, A, shrink)
    vm = pl.BlockSpec(memory_space=pltpu.MemorySpace.VMEM)
    act_pad, logit_pad = pl.pallas_call(
        kernel,
        out_shape=(jax.ShapeDtypeStruct((B, SP), jnp.float32),
                   jax.ShapeDtypeStruct((B, A * SP), jnp.float32)),
        in_specs=[vm] * 13,
        out_specs=(vm, vm),
        scratch_shapes=[pltpu.VMEM((B, L2 * C2), jnp.float32)],
        compiler_params=pltpu.CompilerParams(vmem_limit_bytes=32 * 1024 * 1024),
        # NOTE: gridless single-TC launch; for large batches on v7x, split the
        # batch over a ("parallel",) grid axis to use both TensorCores.
    )(x_im2col, prepped['w1c'], prepped['b1c'], p1s, prepped['w2c'], prepped['b2c'],
      p2sel, prepped['w1l'], prepped['b1l'], prepped['w2l'], prepped['b2l'],
      prepped['w3l'], prepped['b3l'])

    # lane-dense kernel outputs -> module's shapes (cheap XLA slices)
    actions = act_pad[:, :S]
    logits = logit_pad.reshape(B, A, SP)[:, :, :S].reshape(B, A * S)
    return actions, logits


# --------------------------------------------------------------------------
# Deterministic parameter init (PyTorch layout: conv (O,I,K), linear (O,I))
# --------------------------------------------------------------------------
def init_params(key, state_dim, state_len, action_dim, shrink_dim):
    ks = jax.random.split(key, 10)

    def uni(k, shape, fan_in):
        bound = 1.0 / (fan_in ** 0.5)
        return jax.random.uniform(k, shape, jnp.float32, -bound, bound)

    hidden_in = state_len // shrink_dim // shrink_dim * 64
    return {
        'conv1_w': uni(ks[0], (32, state_dim, 3), state_dim * 3),
        'conv1_b': uni(ks[1], (32,), state_dim * 3),
        'conv2_w': uni(ks[2], (64, 32, 3), 32 * 3),
        'conv2_b': uni(ks[3], (64,), 32 * 3),
        'lin1_w': uni(ks[4], (256, hidden_in), hidden_in),
        'lin1_b': uni(ks[5], (256,), hidden_in),
        'lin2_w': uni(ks[6], (256, 256), 256),
        'lin2_b': uni(ks[7], (256,), 256),
        'lin3_w': uni(ks[8], (action_dim * state_len, 256), 256),
        'lin3_b': uni(ks[9], (action_dim * state_len,), 256),
    }


# --------------------------------------------------------------------------
# Pure-JAX reference (for correctness check)
# --------------------------------------------------------------------------
def reference_forward(p, state, action_dim, state_len, shrink):
    def conv_relu(x, w, b):
        y = lax.conv_general_dilated(x, w, (1,), [(1, 1)],
                                     dimension_numbers=('NCH', 'OIH', 'NCH'))
        return jnp.maximum(y + b[None, :, None], 0.0)

    def avgpool(x, k):
        B, C, L = x.shape
        return x[:, :, :(L // k) * k].reshape(B, C, L // k, k).mean(-1)

    y = avgpool(conv_relu(state, p['conv1_w'], p['conv1_b']), shrink)
    y = avgpool(conv_relu(y, p['conv2_w'], p['conv2_b']), shrink)
    B = state.shape[0]
    flat = y.reshape(B, -1)
    h = jnp.maximum(flat @ p['lin1_w'].T + p['lin1_b'], 0.0)
    h = jnp.maximum(h @ p['lin2_w'].T + p['lin2_b'], 0.0)
    logits = h @ p['lin3_w'].T + p['lin3_b']
    probs = jax.nn.softmax(logits.reshape(B, action_dim, state_len), axis=1)
    idx = jnp.argmax(probs, axis=-1)                        # (B, action_dim)
    actions = jnp.zeros((B, state_len), jnp.float32)
    actions = actions.at[jnp.arange(B)[:, None], idx].set(1.0)
    return actions, logits


def actions_from_logits(logits, action_dim, state_len):
    B = logits.shape[0]
    probs = jax.nn.softmax(logits.reshape(B, action_dim, state_len), axis=1)
    idx = jnp.argmax(probs, axis=-1)
    return jnp.zeros((B, state_len), jnp.float32).at[
        jnp.arange(B)[:, None], idx].set(1.0)


if __name__ == "__main__":
    state_dim, state_len, action_dim, shrink_dim = 2, 100, 2, 4
    batch = 2

    key = jax.random.PRNGKey(0)
    pkey, xkey = jax.random.split(key)
    params = init_params(pkey, state_dim, state_len, action_dim, shrink_dim)
    state = jax.random.normal(xkey, (batch, state_dim, state_len), jnp.float32)

    ref_actions, ref_logits = reference_forward(params, state, action_dim,
                                                state_len, shrink_dim)

    fwd = jax.jit(functools.partial(actor_forward, action_dim=action_dim,
                                    shrink_dim=shrink_dim))

    # f32 MXU path: tight numerical check against the pure-JAX reference.
    prepped_f32 = prepare_actor_params(params, state_len, action_dim,
                                       shrink_dim, use_bf16_mlp=False)
    actions, logits = fwd(prepped_f32, state)
    jax.block_until_ready((actions, logits))
    assert actions.shape == (batch, state_len)
    assert logits.shape == (batch, action_dim * state_len)
    assert jnp.allclose(logits, ref_logits, atol=1e-3, rtol=1e-3), "f32 logits mismatch"
    assert jnp.array_equal(actions,
                           actions_from_logits(logits, action_dim, state_len)), \
        "f32 actions inconsistent with logits"

    # bf16-input MXU path (default on all generations, f32 accumulation).
    prepped_bf16 = prepare_actor_params(params, state_len, action_dim,
                                        shrink_dim, use_bf16_mlp=True)
    actions16, logits16 = fwd(prepped_bf16, state)
    jax.block_until_ready((actions16, logits16))
    assert jnp.allclose(logits16, ref_logits, atol=2e-2, rtol=2e-2), "bf16 logits mismatch"
    assert jnp.array_equal(actions16,
                           actions_from_logits(logits16, action_dim, state_len)), \
        "bf16 actions inconsistent with logits"

    print("KERNEL_OK")
</pallas_src>

<mosaic_0001>
module attributes {stable_mosaic.version = 11 : i64} {
  func.func @_actor_fused_kernel(%arg0: memref<6x200xf32, #tpu.memory_space<vmem>>, %arg1: memref<32x6xf32, #tpu.memory_space<vmem>>, %arg2: memref<32x1xf32, #tpu.memory_space<vmem>>, %arg3: memref<3x200x50xf32, #tpu.memory_space<vmem>>, %arg4: memref<3x64x32xf32, #tpu.memory_space<vmem>>, %arg5: memref<64x1xf32, #tpu.memory_space<vmem>>, %arg6: memref<12x50xf32, #tpu.memory_space<vmem>>, %arg7: memref<384x256xf32, #tpu.memory_space<vmem>>, %arg8: memref<1x256xf32, #tpu.memory_space<vmem>>, %arg9: memref<256x256xf32, #tpu.memory_space<vmem>>, %arg10: memref<1x256xf32, #tpu.memory_space<vmem>>, %arg11: memref<256x256xf32, #tpu.memory_space<vmem>>, %arg12: memref<1x256xf32, #tpu.memory_space<vmem>>, %arg13: memref<2x128xf32, #tpu.memory_space<vmem>>, %arg14: memref<2x256xf32, #tpu.memory_space<vmem>>, %arg15: memref<2x384xf32, #tpu.memory_space<vmem>>) attributes {dimension_semantics = [], scalar_prefetch = 0 : i64, scratch_operands = 1 : i64, tpu.core_type = #tpu.core_type<tc>} {
    %c0 = arith.constant 0 : index
    %c0_0 = arith.constant 0 : index
    %0 = vector.load %arg1[%c0, %c0_0] : memref<32x6xf32, #tpu.memory_space<vmem>>, vector<32x6xf32>
    %c0_1 = arith.constant 0 : index
    %c0_2 = arith.constant 0 : index
    %1 = vector.load %arg0[%c0_1, %c0_2] : memref<6x200xf32, #tpu.memory_space<vmem>>, vector<6x200xf32>
    %cst = arith.constant dense<0.000000e+00> : vector<32x200xf32>
    %2 = tpu.matmul %0, %1, %cst {dimension_numbers = #tpu.dot_dimension_numbers<[1], [0], [0], [1], [0, 0, 1, 1], [], []>} : vector<32x6xf32>, vector<6x200xf32>, vector<32x200xf32> -> vector<32x200xf32>
    %c0_3 = arith.constant 0 : index
    %c0_4 = arith.constant 0 : index
    %3 = vector.load %arg2[%c0_3, %c0_4] : memref<32x1xf32, #tpu.memory_space<vmem>>, vector<32x1xf32>
    %4 = vector.broadcast %3 : vector<32x1xf32> to vector<32x200xf32>
    %5 = arith.addf %2, %4 : vector<32x200xf32>
    %cst_5 = arith.constant 0.000000e+00 : f32
    %6 = vector.broadcast %cst_5 : f32 to vector<32x200xf32>
    %7 = arith.maximumf %5, %6 : vector<32x200xf32>
    %c0_6 = arith.constant 0 : index
    %c0_7 = arith.constant 0 : index
    %c0_8 = arith.constant 0 : index
    %8 = vector.load %arg3[%c0_6, %c0_7, %c0_8] : memref<3x200x50xf32, #tpu.memory_space<vmem>>, vector<1x200x50xf32>
    %9 = vector.shape_cast %8 : vector<1x200x50xf32> to vector<200x50xf32>
    %cst_9 = arith.constant dense<0.000000e+00> : vector<32x50xf32>
    %10 = tpu.matmul %7, %9, %cst_9 {dimension_numbers = #tpu.dot_dimension_numbers<[1], [0], [0], [1], [0, 0, 1, 1], [], []>} : vector<32x200xf32>, vector<200x50xf32>, vector<32x50xf32> -> vector<32x50xf32>
    %c0_10 = arith.constant 0 : index
    %c0_11 = arith.constant 0 : index
    %c0_12 = arith.constant 0 : index
    %11 = vector.load %arg4[%c0_10, %c0_11, %c0_12] : memref<3x64x32xf32, #tpu.memory_space<vmem>>, vector<1x64x32xf32>
    %12 = vector.shape_cast %11 : vector<1x64x32xf32> to vector<64x32xf32>
    %cst_13 = arith.constant dense<0.000000e+00> : vector<64x50xf32>
    %13 = tpu.matmul %12, %10, %cst_13 {dimension_numbers = #tpu.dot_dimension_numbers<[1], [0], [0], [1], [0, 0, 1, 1], [], []>} : vector<64x32xf32>, vector<32x50xf32>, vector<64x50xf32> -> vector<64x50xf32>
    %c1 = arith.constant 1 : index
    %c0_14 = arith.constant 0 : index
    %c0_15 = arith.constant 0 : index
    %14 = vector.load %arg3[%c1, %c0_14, %c0_15] : memref<3x200x50xf32, #tpu.memory_space<vmem>>, vector<1x200x50xf32>
    %15 = vector.shape_cast %14 : vector<1x200x50xf32> to vector<200x50xf32>
    %cst_16 = arith.constant dense<0.000000e+00> : vector<32x50xf32>
    %16 = tpu.matmul %7, %15, %cst_16 {dimension_numbers = #tpu.dot_dimension_numbers<[1], [0], [0], [1], [0, 0, 1, 1], [], []>} : vector<32x200xf32>, vector<200x50xf32>, vector<32x50xf32> -> vector<32x50xf32>
    %c1_17 = arith.constant 1 : index
    %c0_18 = arith.constant 0 : index
    %c0_19 = arith.constant 0 : index
    %17 = vector.load %arg4[%c1_17, %c0_18, %c0_19] : memref<3x64x32xf32, #tpu.memory_space<vmem>>, vector<1x64x32xf32>
    %18 = vector.shape_cast %17 : vector<1x64x32xf32> to vector<64x32xf32>
    %cst_20 = arith.constant dense<0.000000e+00> : vector<64x50xf32>
    %19 = tpu.matmul %18, %16, %cst_20 {dimension_numbers = #tpu.dot_dimension_numbers<[1], [0], [0], [1], [0, 0, 1, 1], [], []>} : vector<64x32xf32>, vector<32x50xf32>, vector<64x50xf32> -> vector<64x50xf32>
    %20 = arith.addf %13, %19 : vector<64x50xf32>
    %c2 = arith.constant 2 : index
    %c0_21 = arith.constant 0 : index
    %c0_22 = arith.constant 0 : index
    %21 = vector.load %arg3[%c2, %c0_21, %c0_22] : memref<3x200x50xf32, #tpu.memory_space<vmem>>, vector<1x200x50xf32>
    %22 = vector.shape_cast %21 : vector<1x200x50xf32> to vector<200x50xf32>
    %cst_23 = arith.constant dense<0.000000e+00> : vector<32x50xf32>
    %23 = tpu.matmul %7, %22, %cst_23 {dimension_numbers = #tpu.dot_dimension_numbers<[1], [0], [0], [1], [0, 0, 1, 1], [], []>} : vector<32x200xf32>, vector<200x50xf32>, vector<32x50xf32> -> vector<32x50xf32>
    %c2_24 = arith.constant 2 : index
    %c0_25 = arith.constant 0 : index
    %c0_26 = arith.constant 0 : index
    %24 = vector.load %arg4[%c2_24, %c0_25, %c0_26] : memref<3x64x32xf32, #tpu.memory_space<vmem>>, vector<1x64x32xf32>
    %25 = vector.shape_cast %24 : vector<1x64x32xf32> to vector<64x32xf32>
    %cst_27 = arith.constant dense<0.000000e+00> : vector<64x50xf32>
    %26 = tpu.matmul %25, %23, %cst_27 {dimension_numbers = #tpu.dot_dimension_numbers<[1], [0], [0], [1], [0, 0, 1, 1], [], []>} : vector<64x32xf32>, vector<32x50xf32>, vector<64x50xf32> -> vector<64x50xf32>
    %27 = arith.addf %20, %26 : vector<64x50xf32>
    %c0_28 = arith.constant 0 : index
    %c0_29 = arith.constant 0 : index
    %28 = vector.load %arg5[%c0_28, %c0_29] : memref<64x1xf32, #tpu.memory_space<vmem>>, vector<64x1xf32>
    %29 = vector.broadcast %28 : vector<64x1xf32> to vector<64x50xf32>
    %30 = arith.addf %27, %29 : vector<64x50xf32>
    %cst_30 = arith.constant 0.000000e+00 : f32
    %31 = vector.broadcast %cst_30 : f32 to vector<64x50xf32>
    %32 = arith.maximumf %30, %31 : vector<64x50xf32>
    %c0_31 = arith.constant 0 : index
    %c0_32 = arith.constant 0 : index
    %33 = vector.load %arg6[%c0_31, %c0_32] : memref<12x50xf32, #tpu.memory_space<vmem>>, vector<12x50xf32>
    %cst_33 = arith.constant dense<0.000000e+00> : vector<12x64xf32>
    %34 = tpu.matmul %33, %32, %cst_33 {dimension_numbers = #tpu.dot_dimension_numbers<[1], [1], [0], [0], [0, 0, 1, 0], [], []>} : vector<12x50xf32>, vector<64x50xf32>, vector<12x64xf32> -> vector<12x64xf32>
    %35 = vector.extract_strided_slice %34 {offsets = [0, 0], sizes = [2, 64], strides = [1, 1]} : vector<12x64xf32> to vector<2x64xf32>
    %c0_34 = arith.constant 0 : index
    %c0_35 = arith.constant 0 : index
    %36 = vector.load %arg15[%c0_34, %c0_35] : memref<2x384xf32, #tpu.memory_space<vmem>>, vector<2x64xf32>
    tpu.vector_store %arg15[%c0_34, %c0_35], %35 {strides = array<i32>} : memref<2x384xf32, #tpu.memory_space<vmem>>, vector<2x64xf32>,
    %37 = vector.extract_strided_slice %34 {offsets = [2, 0], sizes = [2, 64], strides = [1, 1]} : vector<12x64xf32> to vector<2x64xf32>
    %c0_36 = arith.constant 0 : index
    %c64 = arith.constant 64 : index
    %38 = vector.load %arg15[%c0_36, %c64] : memref<2x384xf32, #tpu.memory_space<vmem>>, vector<2x64xf32>
    tpu.vector_store %arg15[%c0_36, %c64], %37 {strides = array<i32>} : memref<2x384xf32, #tpu.memory_space<vmem>>, vector<2x64xf32>,
    %39 = vector.extract_strided_slice %34 {offsets = [4, 0], sizes = [2, 64], strides = [1, 1]} : vector<12x64xf32> to vector<2x64xf32>
    %c0_37 = arith.constant 0 : index
    %c128 = arith.constant 128 : index
    %40 = vector.load %arg15[%c0_37, %c128] : memref<2x384xf32, #tpu.memory_space<vmem>>, vector<2x64xf32>
    tpu.vector_store %arg15[%c0_37, %c128], %39 {strides = array<i32>} : memref<2x384xf32, #tpu.memory_space<vmem>>, vector<2x64xf32>,
    %41 = vector.extract_strided_slice %34 {offsets = [6, 0], sizes = [2, 64], strides = [1, 1]} : vector<12x64xf32> to vector<2x64xf32>
    %c0_38 = arith.constant 0 : index
    %c192 = arith.constant 192 : index
    %42 = vector.load %arg15[%c0_38, %c192] : memref<2x384xf32, #tpu.memory_space<vmem>>, vector<2x64xf32>
    tpu.vector_store %arg15[%c0_38, %c192], %41 {strides = array<i32>} : memref<2x384xf32, #tpu.memory_space<vmem>>, vector<2x64xf32>,
    %43 = vector.extract_strided_slice %34 {offsets = [8, 0], sizes = [2, 64], strides = [1, 1]} : vector<12x64xf32> to vector<2x64xf32>
    %c0_39 = arith.constant 0 : index
    %c256 = arith.constant 256 : index
    %44 = vector.load %arg15[%c0_39, %c256] : memref<2x384xf32, #tpu.memory_space<vmem>>, vector<2x64xf32>
    tpu.vector_store %arg15[%c0_39, %c256], %43 {strides = array<i32>} : memref<2x384xf32, #tpu.memory_space<vmem>>, vector<2x64xf32>,
    %45 = vector.extract_strided_slice %34 {offsets = [10, 0], sizes = [2, 64], strides = [1, 1]} : vector<12x64xf32> to vector<2x64xf32>
    %c0_40 = arith.constant 0 : index
    %c320 = arith.constant 320 : index
    %46 = vector.load %arg15[%c0_40, %c320] : memref<2x384xf32, #tpu.memory_space<vmem>>, vector<2x64xf32>
    tpu.vector_store %arg15[%c0_40, %c320], %45 {strides = array<i32>} : memref<2x384xf32, #tpu.memory_space<vmem>>, vector<2x64xf32>,
    %c0_41 = arith.constant 0 : index
    %c0_42 = arith.constant 0 : index
    %47 = vector.load %arg15[%c0_41, %c0_42] : memref<2x384xf32, #tpu.memory_space<vmem>>, vector<2x384xf32>
    %c0_43 = arith.constant 0 : index
    %c0_44 = arith.constant 0 : index
    %48 = vector.load %arg7[%c0_43, %c0_44] : memref<384x256xf32, #tpu.memory_space<vmem>>, vector<384x256xf32>
    %cst_45 = arith.constant dense<0.000000e+00> : vector<2x256xf32>
    %49 = tpu.matmul %47, %48, %cst_45 {dimension_numbers = #tpu.dot_dimension_numbers<[1], [0], [0], [1], [0, 0, 1, 1], [], []>} : vector<2x384xf32>, vector<384x256xf32>, vector<2x256xf32> -> vector<2x256xf32>
    %c0_46 = arith.constant 0 : index
    %c0_47 = arith.constant 0 : index
    %50 = vector.load %arg8[%c0_46, %c0_47] : memref<1x256xf32, #tpu.memory_space<vmem>>, vector<1x256xf32>
    %51 = vector.broadcast %50 : vector<1x256xf32> to vector<2x256xf32>
    %52 = arith.addf %49, %51 : vector<2x256xf32>
    %cst_48 = arith.constant 0.000000e+00 : f32
    %53 = vector.broadcast %cst_48 : f32 to vector<2x256xf32>
    %54 = arith.maximumf %52, %53 : vector<2x256xf32>
    %c0_49 = arith.constant 0 : index
    %c0_50 = arith.constant 0 : index
    %55 = vector.load %arg9[%c0_49, %c0_50] : memref<256x256xf32, #tpu.memory_space<vmem>>, vector<256x256xf32>
    %cst_51 = arith.constant dense<0.000000e+00> : vector<2x256xf32>
    %56 = tpu.matmul %54, %55, %cst_51 {dimension_numbers = #tpu.dot_dimension_numbers<[1], [0], [0], [1], [0, 0, 1, 1], [], []>} : vector<2x256xf32>, vector<256x256xf32>, vector<2x256xf32> -> vector<2x256xf32>
    %c0_52 = arith.constant 0 : index
    %c0_53 = arith.constant 0 : index
    %57 = vector.load %arg10[%c0_52, %c0_53] : memref<1x256xf32, #tpu.memory_space<vmem>>, vector<1x256xf32>
    %58 = vector.broadcast %57 : vector<1x256xf32> to vector<2x256xf32>
    %59 = arith.addf %56, %58 : vector<2x256xf32>
    %cst_54 = arith.constant 0.000000e+00 : f32
    %60 = vector.broadcast %cst_54 : f32 to vector<2x256xf32>
    %61 = arith.maximumf %59, %60 : vector<2x256xf32>
    %c0_55 = arith.constant 0 : index
    %c0_56 = arith.constant 0 : index
    %62 = vector.load %arg11[%c0_55, %c0_56] : memref<256x256xf32, #tpu.memory_space<vmem>>, vector<256x256xf32>
    %cst_57 = arith.constant dense<0.000000e+00> : vector<2x256xf32>
    %63 = tpu.matmul %61, %62, %cst_57 {dimension_numbers = #tpu.dot_dimension_numbers<[1], [0], [0], [1], [0, 0, 1, 1], [], []>} : vector<2x256xf32>, vector<256x256xf32>, vector<2x256xf32> -> vector<2x256xf32>
    %c0_58 = arith.constant 0 : index
    %c0_59 = arith.constant 0 : index
    %64 = vector.load %arg12[%c0_58, %c0_59] : memref<1x256xf32, #tpu.memory_space<vmem>>, vector<1x256xf32>
    %65 = vector.broadcast %64 : vector<1x256xf32> to vector<2x256xf32>
    %66 = arith.addf %63, %65 : vector<2x256xf32>
    %c0_60 = arith.constant 0 : index
    %c0_61 = arith.constant 0 : index
    %67 = vector.load %arg14[%c0_60, %c0_61] : memref<2x256xf32, #tpu.memory_space<vmem>>, vector<2x256xf32>
    tpu.vector_store %arg14[%c0_60, %c0_61], %66 {strides = array<i32>} : memref<2x256xf32, #tpu.memory_space<vmem>>, vector<2x256xf32>,
    %68 = vector.extract_strided_slice %66 {offsets = [0, 0], sizes = [2, 128], strides = [1, 1]} : vector<2x256xf32> to vector<2x128xf32>
    %69 = vector.extract_strided_slice %66 {offsets = [0, 128], sizes = [2, 128], strides = [1, 1]} : vector<2x256xf32> to vector<2x128xf32>
    %70 = arith.maximumf %68, %69 : vector<2x128xf32>
    %71 = arith.subf %68, %70 : vector<2x128xf32>
    %72 = math.exp %71 : vector<2x128xf32>
    %73 = arith.subf %69, %70 : vector<2x128xf32>
    %74 = math.exp %73 : vector<2x128xf32>
    %75 = arith.addf %72, %74 : vector<2x128xf32>
    %76 = tpu.reciprocal %75 : vector<2x128xf32> -> vector<2x128xf32>
    %77 = tpu.iota {dimensions = array<i32: 1>} : vector<2x128xi32>
    %c100_i32 = arith.constant 100 : i32
    %78 = vector.broadcast %c100_i32 : i32 to vector<2x128xi32>
    %79 = arith.cmpi slt, %77, %78 : vector<2x128xi32>
    %false = arith.constant false
    %80 = vector.broadcast %false : i1 to vector<2x128xi1>
    %81 = arith.mulf %72, %76 : vector<2x128xf32>
    %cst_62 = arith.constant -1.000000e+00 : f32
    %82 = vector.broadcast %cst_62 : f32 to vector<2x128xf32>
    %83 = arith.select %79, %81, %82 : vector<2x128xi1>, vector<2x128xf32>
    %cst_63 = arith.constant dense<0xFF800000> : vector<2xf32>
    %84 = vector.multi_reduction <maximumf>, %83, %cst_63 [1] : vector<2x128xf32> to vector<2xf32>
    %85 = vector.shape_cast %84 : vector<2xf32> to vector<2x1xf32>
    %86 = vector.broadcast %85 : vector<2x1xf32> to vector<2x128xf32>
    %87 = arith.cmpf oge, %83, %86 : vector<2x128xf32>
    %c128_i32 = arith.constant 128 : i32
    %88 = vector.broadcast %c128_i32 : i32 to vector<2x128xi32>
    %89 = arith.select %87, %77, %88 : vector<2x128xi1>, vector<2x128xi32>
    %cst_64 = arith.constant dense<2147483647> : vector<2xi32>
    %90 = vector.multi_reduction <minsi>, %89, %cst_64 [1] : vector<2x128xi32> to vector<2xi32>
    %91 = vector.shape_cast %90 : vector<2xi32> to vector<2x1xi32>
    %92 = vector.broadcast %91 : vector<2x1xi32> to vector<2x128xi32>
    %93 = arith.cmpi eq, %77, %92 : vector<2x128xi32>
    %94 = arith.ori %80, %93 : vector<2x128xi1>
    %95 = arith.mulf %74, %76 : vector<2x128xf32>
    %cst_65 = arith.constant -1.000000e+00 : f32
    %96 = vector.broadcast %cst_65 : f32 to vector<2x128xf32>
    %97 = arith.select %79, %95, %96 : vector<2x128xi1>, vector<2x128xf32>
    %cst_66 = arith.constant dense<0xFF800000> : vector<2xf32>
    %98 = vector.multi_reduction <maximumf>, %97, %cst_66 [1] : vector<2x128xf32> to vector<2xf32>
    %99 = vector.shape_cast %98 : vector<2xf32> to vector<2x1xf32>
    %100 = vector.broadcast %99 : vector<2x1xf32> to vector<2x128xf32>
    %101 = arith.cmpf oge, %97, %100 : vector<2x128xf32>
    %c128_i32_67 = arith.constant 128 : i32
    %102 = vector.broadcast %c128_i32_67 : i32 to vector<2x128xi32>
    %103 = arith.select %101, %77, %102 : vector<2x128xi1>, vector<2x128xi32>
    %cst_68 = arith.constant dense<2147483647> : vector<2xi32>
    %104 = vector.multi_reduction <minsi>, %103, %cst_68 [1] : vector<2x128xi32> to vector<2xi32>
    %105 = vector.shape_cast %104 : vector<2xi32> to vector<2x1xi32>
    %106 = vector.broadcast %105 : vector<2x1xi32> to vector<2x128xi32>
    %107 = arith.cmpi eq, %77, %106 : vector<2x128xi32>
    %108 = arith.ori %94, %107 : vector<2x128xi1>
    %cst_69 = arith.constant 1.000000e+00 : f32
    %cst_70 = arith.constant 0.000000e+00 : f32
    %109 = vector.broadcast %cst_69 : f32 to vector<2x128xf32>
    %110 = vector.broadcast %cst_70 : f32 to vector<2x128xf32>
    %111 = arith.select %108, %109, %110 : vector<2x128xi1>, vector<2x128xf32>
    %c0_71 = arith.constant 0 : index
    %c0_72 = arith.constant 0 : index
    %112 = vector.load %arg13[%c0_71, %c0_72] : memref<2x128xf32, #tpu.memory_space<vmem>>, vector<2x128xf32>
    tpu.vector_store %arg13[%c0_71, %c0_72], %111 {strides = array<i32>} : memref<2x128xf32, #tpu.memory_space<vmem>>, vector<2x128xf32>,
    return
  }
}

</mosaic_0001>

<llo_original>
// kernel: actor_forward.1
$region0: #{actor_forward.1}
  #allocation0 [shape = 'u32[]', space=smem, size = 0x4, offset = 0x4, fixed_abs, tag = 'smem constant byte address 0x4 - core index']
  #allocation1 [shape = 'u32[144,128]{1,0:T(1,128)}', space=vmem, size = 0x12000, scoped, tag = 'internal scratch']
  #allocation2 [shape = 'f32[2,384]{1,0:T(2,128)}', space=vmem, size = 0xc00, scoped, tag = 'scratch operand']
  %s0 = inlined_call_operand.vmem [shape: f32[6,200], index: 0, kind: input, shape index: {}]
  %s1 = inlined_call_operand.vmem [shape: f32[32,6], index: 1, kind: input, shape index: {}]
  %s2 = inlined_call_operand.vmem [shape: f32[32,1], index: 2, kind: input, shape index: {}]
  %s3 = inlined_call_operand.hbm [shape: f32[3,200,50], index: 3, kind: input, shape index: {}]
  %s4 = inlined_call_operand.vmem [shape: f32[3,64,32], index: 4, kind: input, shape index: {}]
  %s5 = inlined_call_operand.vmem [shape: f32[64,1], index: 5, kind: input, shape index: {}]
  %s6 = inlined_call_operand.vmem [shape: f32[12,50], index: 6, kind: input, shape index: {}]
  %s7 = inlined_call_operand.hbm [shape: f32[384,256], index: 7, kind: input, shape index: {}]
  %s8 = inlined_call_operand.vmem [shape: f32[1,256], index: 8, kind: input, shape index: {}]
  %s9 = inlined_call_operand.vmem [shape: f32[256,256], index: 9, kind: input, shape index: {}]
  %s10 = inlined_call_operand.vmem [shape: f32[1,256], index: 10, kind: input, shape index: {}]
  %s11 = inlined_call_operand.hbm [shape: f32[256,256], index: 11, kind: input, shape index: {}]
  %s12 = inlined_call_operand.vmem [shape: f32[1,256], index: 12, kind: input, shape index: {}]
  %s13 = inlined_call_operand.hbm [shape: f32[2,128], index: 13, kind: output, shape index: {0}]
  %s14 = inlined_call_operand.vmem [shape: f32[2,256], index: 14, kind: output, shape index: {1}]
  %15 = xla_tuple %s13, %s14
  %s16 = sld [smem:[#allocation0]]
  $region82: #{actor_forward.1} parent=0
    _
  %s18 = ssub.s32 1, %s16
  %s19 = scalar_select 0, %s18, %s16
  $region1: #{actor_forward.1} parent=0
    #allocation3 [shape = 'u8[307200]{0}', space=vmem, size = 0x4b000, scoped, tag = 'input window, operand 3, single buffered']
    #allocation4 [shape = 's32[1]{0}', space=sflag, size = 0x4, scoped, tag = 'scoped memory for actor_forward.1']
    #allocation5 [shape = 's32[1]{0}', space=sflag, size = 0x4, scoped, tag = 'scoped memory for actor_forward.1']
    #allocation6 [shape = 'u8[393216]{0}', space=vmem, size = 0x60000, scoped, tag = 'input window, operand 7, single buffered']
    #allocation7 [shape = 's32[1]{0}', space=sflag, size = 0x4, scoped, tag = 'scoped memory for actor_forward.1']
    #allocation8 [shape = 'u8[262144]{0}', space=vmem, size = 0x40000, scoped, tag = 'input window, operand 11, single buffered']
    #allocation9 [shape = 'u8[1024]{0}', space=vmem, size = 0x400, scoped, tag = 'output window, operand 0, single buffered']
    %20 = vsyncpa [#allocation4], 0
    %21 = vsyncpa [#allocation7], 0
    %22 = vsyncpa [#allocation5], 0
    // Predicated region
    $region2: #{actor_forward.1} parent=1 // pred_check
      _
    $region3: #{actor_forward.1} parent=1 // pred_check_branch
      %24 = sbr.rel (0) target = $region5
    $region4: #{actor_forward.1} parent=1 // pred_region
      _
    $region5: #{actor_forward.1} parent=1 // pred_fallthru
      _
    // Predicated region
    $region6: #{actor_forward.1} parent=1 // pred_check
      _
    $region7: #{actor_forward.1} parent=1 // pred_check_branch
      %26 = sbr.rel (0) target = $region9
    $region8: #{actor_forward.1} parent=1 // pred_region
      _
    $region9: #{actor_forward.1} parent=1 // pred_fallthru
      _
    // Predicated region
    $region10: #{actor_forward.1} parent=1 // pred_check
      _
    $region11: #{actor_forward.1} parent=1 // pred_check_branch
      %28 = sbr.rel (0) target = $region13
    $region12: #{actor_forward.1} parent=1 // pred_region
      _
    $region13: #{actor_forward.1} parent=1 // pred_fallthru
      _
    // Predicated region
    $region14: #{actor_forward.1} parent=1 // pred_check
      _
    $region15: #{actor_forward.1} parent=1 // pred_check_branch
      %30 = sbr.rel (0) target = $region17
    $region16: #{actor_forward.1} parent=1 // pred_region
      %s32 = ssub.s32 9600, 9600
      %33 = vsyncadd [#allocation4], %s32
      %s34 = sshll.u32 [#allocation3], 4
      %s35 = int_to_ptr.vmem [resolvable:$true] %s34
      %40 = dma.hbm_to_vmem [thread:$0]  %s3, 9600, %s35, [#allocation4], 128, 128, 8
    $region17: #{actor_forward.1} parent=1 // pred_fallthru
      _
    // Predicated region
    $region18: #{actor_forward.1} parent=1 // pred_check
      _
    $region19: #{actor_forward.1} parent=1 // pred_check_branch
      %42 = sbr.rel (0) target = $region21
    $region20: #{actor_forward.1} parent=1 // pred_region
      _
    $region21: #{actor_forward.1} parent=1 // pred_fallthru
      _
    // Predicated region
    $region22: #{actor_forward.1} parent=1 // pred_check
      _
    $region23: #{actor_forward.1} parent=1 // pred_check_branch
      %44 = sbr.rel (0) target = $region25
    $region24: #{actor_forward.1} parent=1 // pred_region
      _
    $region25: #{actor_forward.1} parent=1 // pred_fallthru
      _
    // Predicated region
    $region26: #{actor_forward.1} parent=1 // pred_check
      _
    $region27: #{actor_forward.1} parent=1 // pred_check_branch
      %46 = sbr.rel (0) target = $region29
    $region28: #{actor_forward.1} parent=1 // pred_region
      _
    $region29: #{actor_forward.1} parent=1 // pred_fallthru
      _
    // Predicated region
    $region30: #{actor_forward.1} parent=1 // pred_check
      _
    $region31: #{actor_forward.1} parent=1 // pred_check_branch
      %48 = sbr.rel (0) target = $region33
    $region32: #{actor_forward.1} parent=1 // pred_region
      %s50 = ssub.s32 12288, 12288
      %51 = vsyncadd [#allocation7], %s50
      %s52 = sshll.u32 [#allocation6], 4
      %s53 = int_to_ptr.vmem [resolvable:$true] %s52
      %58 = dma.hbm_to_vmem [thread:$0]  %s7, 12288, %s53, [#allocation7], 256, 256, 16
    $region33: #{actor_forward.1} parent=1 // pred_fallthru
      _
    // Predicated region
    $region34: #{actor_forward.1} parent=1 // pred_check
      _
    $region35: #{actor_forward.1} parent=1 // pred_check_branch
      %60 = sbr.rel (0) target = $region37
    $region36: #{actor_forward.1} parent=1 // pred_region
      _
    $region37: #{actor_forward.1} parent=1 // pred_fallthru
      _
    // Predicated region
    $region38: #{actor_forward.1} parent=1 // pred_check
      _
    $region39: #{actor_forward.1} parent=1 // pred_check_branch
      %62 = sbr.rel (0) target = $region41
    $region40: #{actor_forward.1} parent=1 // pred_region
      _
    $region41: #{actor_forward.1} parent=1 // pred_fallthru
      _
    // Predicated region
    $region42: #{actor_forward.1} parent=1 // pred_check
      _
    $region43: #{actor_forward.1} parent=1 // pred_check_branch
      %64 = sbr.rel (0) target = $region45
    $region44: #{actor_forward.1} parent=1 // pred_region
      _
    $region45: #{actor_forward.1} parent=1 // pred_fallthru
      _
    // Predicated region
    $region46: #{actor_forward.1} parent=1 // pred_check
      _
    $region47: #{actor_forward.1} parent=1 // pred_check_branch
      %66 = sbr.rel (0) target = $region49
    $region48: #{actor_forward.1} parent=1 // pred_region
      %s68 = ssub.s32 8192, 8192
      %69 = vsyncadd [#allocation7], %s68
      %s70 = sshll.u32 [#allocation8], 4
      %s71 = int_to_ptr.vmem [resolvable:$true] %s70
      %76 = dma.hbm_to_vmem [thread:$0]  %s11, 8192, %s71, [#allocation7], 256, 256, 16
    $region49: #{actor_forward.1} parent=1 // pred_fallthru
      _
    // Predicated region
    $region50: #{actor_forward.1} parent=1 // pred_check
      _
    $region51: #{actor_forward.1} parent=1 // pred_check_branch
      %78 = sbr.rel (0) target = $region53
    $region52: #{actor_forward.1} parent=1 // pred_region
      _
    $region53: #{actor_forward.1} parent=1 // pred_fallthru
      _
    // Predicated region
    $region54: #{actor_forward.1} parent=1 // pred_check
      _
    $region55: #{actor_forward.1} parent=1 // pred_check_branch
      %80 = sbr.rel (0) target = $region57
    $region56: #{actor_forward.1} parent=1 // pred_region
      %81 = dma.done [#allocation4], 9600
    $region57: #{actor_forward.1} parent=1 // pred_fallthru
      _
    // Predicated region
    $region58: #{actor_forward.1} parent=1 // pred_check
      _
    $region59: #{actor_forward.1} parent=1 // pred_check_branch
      %83 = sbr.rel (0) target = $region61
    $region60: #{actor_forward.1} parent=1 // pred_region
      %84 = dma.done [#allocation7], 12288
    $region61: #{actor_forward.1} parent=1 // pred_fallthru
      _
    // Predicated region
    $region62: #{actor_forward.1} parent=1 // pred_check
      _
    $region63: #{actor_forward.1} parent=1 // pred_check_branch
      %86 = sbr.rel (0) target = $region65
    $region64: #{actor_forward.1} parent=1 // pred_region
      %87 = dma.done [#allocation7], 8192
    $region65: #{actor_forward.1} parent=1 // pred_fallthru
      _
    %v88 = vld [vmem:[%s1] sm:$0xff]
    %v89 = vld [vmem:[%s1 + $0x8] sm:$0xff]
    %v90 = vld [vmem:[%s1 + $0x10] sm:$0xff]
    %v91 = vld [vmem:[%s1 + $0x18] sm:$0xff]
    %v92 = vld [vmem:[%s0] sm:$0x3f]
    %v93 = vld [vmem:[%s0 + $0x8] sm:$0x3f]
    %v94 = vld [vmem:[%s2] sm:$0xff]
    %v95 = vld [vmem:[%s2 + $0x8] sm:$0xff]
    %v96 = vld [vmem:[%s2 + $0x10] sm:$0xff]
    %v97 = vld [vmem:[%s2 + $0x18] sm:$0xff]
    %99 = vset.pattern.permute.xlu0 0
    %100 = vperm.xlu0 %99, %v94
    %v101 = vpop.permute.xlu0 %100
    %104 = vset.pattern.permute.xlu0 0
    %105 = vperm.xlu0 %104, %v95
    %v106 = vpop.permute.xlu0 %105
    %109 = vset.pattern.permute.xlu0 0
    %110 = vperm.xlu0 %109, %v96
    %v111 = vpop.permute.xlu0 %110
    %114 = vset.pattern.permute.xlu0 0
    %115 = vperm.xlu0 %114, %v97
    %v116 = vpop.permute.xlu0 %115
    %vm118 = vcmask 48128
    %v120 = vsel %vm118, %v88, 0
    %v123 = vsel %vm118, %v89, 0
    %v126 = vsel %vm118, %v90, 0
    %v129 = vsel %vm118, %v91, 0
    %vm131 = vcmask 1045504
    %v133 = vsel %vm131, %v92, 0
    %v136 = vsel %vm131, %v93, 0
    %138 = vmatprep.subr.mxu0 %v136
    %139 = vmatpush1.msra.mxu0 %v133
    %140 = vmatprep.subr.mxu0 0.0
    %141 = vmatpush1.msra.mxu0 0.0
    %142 = vmatprep.subr.mxu0 0.0
    %143 = vmatpush1.msra.mxu0 0.0
    %144 = vmatprep.subr.mxu0 0.0
    %145 = vmatpush1.msra.mxu0 0.0
    %146 = vmatprep.subr.mxu0 0.0
    %147 = vmatpush1.msra.mxu0 0.0
    %148 = vmatprep.subr.mxu0 0.0
    %149 = vmatpush1.msra.mxu0 0.0
    %150 = vmatprep.subr.mxu0 0.0
    %151 = vmatpush1.msra.mxu0 0.0
    %152 = vmatprep.subr.mxu0 0.0
    %153 = vmatpush1.msra.mxu0 0.0
    %154 = vmatprep.subr.mxu0 0.0
    %155 = vmatpush1.msra.mxu0 0.0
    %156 = vmatprep.subr.mxu0 0.0
    %157 = vmatpush1.msra.mxu0 0.0
    %158 = vmatprep.subr.mxu0 0.0
    %159 = vmatpush1.msra.mxu0 0.0
    %160 = vmatprep.subr.mxu0 0.0
    %161 = vmatpush1.msra.mxu0 0.0
    %162 = vmatprep.subr.mxu0 0.0
    %163 = vmatpush1.msra.mxu0 0.0
    %164 = vmatprep.subr.mxu0 0.0
    %165 = vmatpush1.msra.mxu0 0.0
    %166 = vmatprep.subr.mxu0 0.0
    %167 = vmatpush1.msra.mxu0 0.0
    %168 = vmatprep.subr.mxu0 0.0
    %169 = vmatpush1.msra.mxu0 0.0
    %170 = vmatprep.subr.mxu0 0.0
    %171 = vmatpush1.msra.mxu0 0.0
    %172 = vmatprep.subr.mxu0 0.0
    %173 = vmatpush1.msra.mxu0 0.0
    %174 = vmatprep.subr.mxu0 0.0
    %175 = vmatpush1.msra.mxu0 0.0
    %176 = vmatprep.subr.mxu0 0.0
    %177 = vmatpush1.msra.mxu0 0.0
    %178 = vmatprep.subr.mxu0 0.0
    %179 = vmatpush1.msra.mxu0 0.0
    %180 = vmatprep.subr.mxu0 0.0
    %181 = vmatpush1.msra.mxu0 0.0
    %182 = vmatprep.subr.mxu0 0.0
    %183 = vmatpush1.msra.mxu0 0.0
    %184 = vmatprep.subr.mxu0 0.0
    %185 = vmatpush1.msra.mxu0 0.0
    %186 = vmatprep.subr.mxu0 0.0
    %187 = vmatpush1.msra.mxu0 0.0
    %188 = vmatprep.subr.mxu0 0.0
    %189 = vmatpush1.msra.mxu0 0.0
    %190 = vmatprep.subr.mxu0 0.0
    %191 = vmatpush1.msra.mxu0 0.0
    %192 = vmatprep.subr.mxu0 0.0
    %193 = vmatpush1.msra.mxu0 0.0
    %194 = vmatprep.subr.mxu0 0.0
    %195 = vmatpush1.msra.mxu0 0.0
    %196 = vmatprep.subr.mxu0 0.0
    %197 = vmatpush1.msra.mxu0 0.0
    %198 = vmatprep.subr.mxu0 0.0
    %199 = vmatpush1.msra.mxu0 0.0
    %200 = vmatprep.subr.mxu0 0.0
    %201 = vmatpush1.msra.mxu0 0.0
    %202 = vmatprep.mubr.f32.mxu0 0.0
    %203 = vmatmul.mubr.f32.gmra.mrb[0].mxu0 %v120
    %v204 = vpop.f32.mrb[0].mxu0
    %v205 = vadd.f32 %v101, %v204
    %v206 = vpop.f32.mrb[0].mxu0
    %v207 = vadd.f32 %v101, %v206
    %208 = vmatprep.mubr.f32.mxu0 0.0
    %209 = vmatmul.mubr.f32.gmra.mrb[0].mxu0 %v123
    %v210 = vpop.f32.mrb[0].mxu0
    %v211 = vadd.f32 %v106, %v210
    %v212 = vpop.f32.mrb[0].mxu0
    %v213 = vadd.f32 %v106, %v212
    %214 = vmatprep.mubr.f32.mxu0 0.0
    %215 = vmatmul.mubr.f32.gmra.mrb[0].mxu0 %v126
    %v216 = vpop.f32.mrb[0].mxu0
    %v217 = vadd.f32 %v111, %v216
    %v218 = vpop.f32.mrb[0].mxu0
    %v219 = vadd.f32 %v111, %v218
    %220 = vmatprep.mubr.f32.mxu0 0.0
    %221 = vmatmul.mubr.f32.gmra.mrb[0].mxu0 %v129
    %v222 = vpop.f32.mrb[0].mxu0
    %v223 = vadd.f32 %v116, %v222
    %v224 = vpop.f32.mrb[0].mxu0
    %v225 = vadd.f32 %v116, %v224
    %226 = vdwg.mxu0
    %v227 = vmax.f32 %v205, 0.0
    %v228 = vmax.f32 %v207, 0.0
    %v229 = vmax.f32 %v211, 0.0
    %v230 = vmax.f32 %v213, 0.0
    %v231 = vmax.f32 %v217, 0.0
    %v232 = vmax.f32 %v219, 0.0
    %v233 = vmax.f32 %v223, 0.0
    %v234 = vmax.f32 %v225, 0.0
    %v235 = vld [vmem:[#allocation3] sm:$0xff]
    %v236 = vld [vmem:[#allocation3 + $0x8] sm:$0xff]
    %v237 = vld [vmem:[#allocation3 + $0x10] sm:$0xff]
    %v238 = vld [vmem:[#allocation3 + $0x18] sm:$0xff]
    %v239 = vld [vmem:[#allocation3 + $0x20] sm:$0xff]
    %v240 = vld [vmem:[#allocation3 + $0x28] sm:$0xff]
    %v241 = vld [vmem:[#allocation3 + $0x30] sm:$0xff]
    %v242 = vld [vmem:[#allocation3 + $0x38] sm:$0xff]
    %v243 = vld [vmem:[#allocation3 + $0x40] sm:$0xff]
    %v244 = vld [vmem:[#allocation3 + $0x48] sm:$0xff]
    %v245 = vld [vmem:[#allocation3 + $0x50] sm:$0xff]
    %v246 = vld [vmem:[#allocation3 + $0x58] sm:$0xff]
    %v247 = vld [vmem:[#allocation3 + $0x60] sm:$0xff]
    %v248 = vld [vmem:[#allocation3 + $0x68] sm:$0xff]
    %v249 = vld [vmem:[#allocation3 + $0x70] sm:$0xff]
    %v250 = vld [vmem:[#allocation3 + $0x78] sm:$0xff]
    %v251 = vld [vmem:[#allocation3 + $0x80] sm:$0xff]
    %v252 = vld [vmem:[#allocation3 + $0x88] sm:$0xff]
    %v253 = vld [vmem:[#allocation3 + $0x90] sm:$0xff]
    %v254 = vld [vmem:[#allocation3 + $0x98] sm:$0xff]
    %v255 = vld [vmem:[#allocation3 + $0xa0] sm:$0xff]
    %v256 = vld [vmem:[#allocation3 + $0xa8] sm:$0xff]
    %v257 = vld [vmem:[#allocation3 + $0xb0] sm:$0xff]
    %v258 = vld [vmem:[#allocation3 + $0xb8] sm:$0xff]
    %v259 = vld [vmem:[#allocation3 + $0xc0] sm:$0xff]
    %vm260 = vcmask 588800
    %v262 = vsel %vm260, %v228, 0
    %v265 = vsel %vm260, %v230, 0
    %v268 = vsel %vm260, %v232, 0
    %v271 = vsel %vm260, %v234, 0
    %273 = vmatprep.subr.mxu0 0.0
    %274 = vmatpush1.msra.mxu0 %v235
    %275 = vmatprep.subr.mxu0 0.0
    %276 = vmatpush1.msra.mxu0 %v236
    %277 = vmatprep.subr.mxu0 0.0
    %278 = vmatpush1.msra.mxu0 %v237
    %279 = vmatprep.subr.mxu0 0.0
    %280 = vmatpush1.msra.mxu0 %v238
    %281 = vmatprep.subr.mxu0 0.0
    %282 = vmatpush1.msra.mxu0 %v239
    %283 = vmatprep.subr.mxu0 0.0
    %284 = vmatpush1.msra.mxu0 %v240
    %285 = vmatprep.subr.mxu0 0.0
    %286 = vmatpush1.msra.mxu0 %v241
    %287 = vmatprep.subr.mxu0 0.0
    %288 = vmatpush1.msra.mxu0 %v242
    %289 = vmatprep.subr.mxu0 0.0
    %290 = vmatpush1.msra.mxu0 %v243
    %291 = vmatprep.subr.mxu0 0.0
    %292 = vmatpush1.msra.mxu0 %v244
    %293 = vmatprep.subr.mxu0 0.0
    %294 = vmatpush1.msra.mxu0 %v245
    %295 = vmatprep.subr.mxu0 0.0
    %296 = vmatpush1.msra.mxu0 %v246
    %297 = vmatprep.subr.mxu0 0.0
    %298 = vmatpush1.msra.mxu0 %v247
    %299 = vmatprep.subr.mxu0 0.0
    %300 = vmatpush1.msra.mxu0 %v248
    %301 = vmatprep.subr.mxu0 0.0
    %302 = vmatpush1.msra.mxu0 %v249
    %303 = vmatprep.subr.mxu0 0.0
    %304 = vmatpush1.msra.mxu0 %v250
    %305 = vmatprep.subr.mxu0 0.0
    %306 = vmatpush1.msra.mxu0 %v251
    %307 = vmatprep.subr.mxu0 0.0
    %308 = vmatpush1.msra.mxu0 %v252
    %309 = vmatprep.subr.mxu0 0.0
    %310 = vmatpush1.msra.mxu0 %v253
    %311 = vmatprep.subr.mxu0 0.0
    %312 = vmatpush1.msra.mxu0 %v254
    %313 = vmatprep.subr.mxu0 0.0
    %314 = vmatpush1.msra.mxu0 %v255
    %315 = vmatprep.subr.mxu0 0.0
    %316 = vmatpush1.msra.mxu0 %v256
    %317 = vmatprep.subr.mxu0 0.0
    %318 = vmatpush1.msra.mxu0 %v257
    %319 = vmatprep.subr.mxu0 0.0
    %320 = vmatpush1.msra.mxu0 %v258
    %321 = vmatprep.subr.mxu0 0.0
    %322 = vmatpush1.msra.mxu0 %v259
    %323 = vmatprep.subr.mxu0 0.0
    %324 = vmatpush1.msra.mxu0 0.0
    %325 = vmatprep.subr.mxu0 0.0
    %326 = vmatpush1.msra.mxu0 0.0
    %327 = vmatprep.subr.mxu0 0.0
    %328 = vmatpush1.msra.mxu0 0.0
    %329 = vmatprep.subr.mxu0 0.0
    %330 = vmatpush1.msra.mxu0 0.0
    %331 = vmatprep.subr.mxu0 0.0
    %332 = vmatpush1.msra.mxu0 0.0
    %333 = vmatprep.subr.mxu0 0.0
    %334 = vmatpush1.msra.mxu0 0.0
    %335 = vmatprep.subr.mxu0 0.0
    %336 = vmatpush1.msra.mxu0 0.0
    %337 = vmatprep.mubr.f32.mxu0 %v262
    %338 = vmatmul.mubr.f32.gmra.mrb[0].mxu0 %v227
    %v339 = vpop.f32.mrb[0].mxu0
    %v340 = vadd.f32 0.0, %v339
    %v341 = vpop.f32.mrb[0].mxu0
    %342 = vmatprep.mubr.f32.mxu0 %v265
    %343 = vmatmul.mubr.f32.gmra.mrb[0].mxu0 %v229
    %v344 = vpop.f32.mrb[0].mxu0
    %v345 = vadd.f32 0.0, %v344
    %v346 = vpop.f32.mrb[0].mxu0
    %347 = vmatprep.mubr.f32.mxu0 %v268
    %348 = vmatmul.mubr.f32.gmra.mrb[0].mxu0 %v231
    %v349 = vpop.f32.mrb[0].mxu0
    %v350 = vadd.f32 0.0, %v349
    %v351 = vpop.f32.mrb[0].mxu0
    %352 = vmatprep.mubr.f32.mxu0 %v271
    %353 = vmatmul.mubr.f32.gmra.mrb[0].mxu0 %v233
    %v354 = vpop.f32.mrb[0].mxu0
    %v355 = vadd.f32 0.0, %v354
    %v356 = vpop.f32.mrb[0].mxu0
    %357 = vdwg.mxu0
    %v358 = vld [vmem:[%s4] sm:$0xff]
    %v359 = vld [vmem:[%s4 + $0x8] sm:$0xff]
    %v360 = vld [vmem:[%s4 + $0x10] sm:$0xff]
    %v361 = vld [vmem:[%s4 + $0x18] sm:$0xff]
    %v362 = vld [vmem:[%s4 + $0x20] sm:$0xff]
    %v363 = vld [vmem:[%s4 + $0x28] sm:$0xff]
    %v364 = vld [vmem:[%s4 + $0x30] sm:$0xff]
    %v365 = vld [vmem:[%s4 + $0x38] sm:$0xff]
    %s366 = scalar_lea.vmem [#allocation3], 200
    %v367 = vld [vmem:[%s366] sm:$0xff]
    %v368 = vld [vmem:[%s366 + $0x8] sm:$0xff]
    %v369 = vld [vmem:[%s366 + $0x10] sm:$0xff]
    %v370 = vld [vmem:[%s366 + $0x18] sm:$0xff]
    %v371 = vld [vmem:[%s366 + $0x20] sm:$0xff]
    %v372 = vld [vmem:[%s366 + $0x28] sm:$0xff]
    %v373 = vld [vmem:[%s366 + $0x30] sm:$0xff]
    %v374 = vld [vmem:[%s366 + $0x38] sm:$0xff]
    %v375 = vld [vmem:[%s366 + $0x40] sm:$0xff]
    %v376 = vld [vmem:[%s366 + $0x48] sm:$0xff]
    %v377 = vld [vmem:[%s366 + $0x50] sm:$0xff]
    %v378 = vld [vmem:[%s366 + $0x58] sm:$0xff]
    %v379 = vld [vmem:[%s366 + $0x60] sm:$0xff]
    %v380 = vld [vmem:[%s366 + $0x68] sm:$0xff]
    %v381 = vld [vmem:[%s366 + $0x70] sm:$0xff]
    %v382 = vld [vmem:[%s366 + $0x78] sm:$0xff]
    %v383 = vld [vmem:[%s366 + $0x80] sm:$0xff]
    %v384 = vld [vmem:[%s366 + $0x88] sm:$0xff]
    %v385 = vld [vmem:[%s366 + $0x90] sm:$0xff]
    %v386 = vld [vmem:[%s366 + $0x98] sm:$0xff]
    %v387 = vld [vmem:[%s366 + $0xa0] sm:$0xff]
    %v388 = vld [vmem:[%s366 + $0xa8] sm:$0xff]
    %v389 = vld [vmem:[%s366 + $0xb0] sm:$0xff]
    %v390 = vld [vmem:[%s366 + $0xb8] sm:$0xff]
    %v391 = vld [vmem:[%s366 + $0xc0] sm:$0xff]
    %392 = vmatprep.subr.mxu0 0.0
    %393 = vmatpush1.msra.mxu0 %v367
    %394 = vmatprep.subr.mxu0 0.0
    %395 = vmatpush1.msra.mxu0 %v368
    %396 = vmatprep.subr.mxu0 0.0
    %397 = vmatpush1.msra.mxu0 %v369
    %398 = vmatprep.subr.mxu0 0.0
    %399 = vmatpush1.msra.mxu0 %v370
    %400 = vmatprep.subr.mxu0 0.0
    %401 = vmatpush1.msra.mxu0 %v371
    %402 = vmatprep.subr.mxu0 0.0
    %403 = vmatpush1.msra.mxu0 %v372
    %404 = vmatprep.subr.mxu0 0.0
    %405 = vmatpush1.msra.mxu0 %v373
    %406 = vmatprep.subr.mxu0 0.0
    %407 = vmatpush1.msra.mxu0 %v374
    %408 = vmatprep.subr.mxu0 0.0
    %409 = vmatpush1.msra.mxu0 %v375
    %410 = vmatprep.subr.mxu0 0.0
    %411 = vmatpush1.msra.mxu0 %v376
    %412 = vmatprep.subr.mxu0 0.0
    %413 = vmatpush1.msra.mxu0 %v377
    %414 = vmatprep.subr.mxu0 0.0
    %415 = vmatpush1.msra.mxu0 %v378
    %416 = vmatprep.subr.mxu0 0.0
    %417 = vmatpush1.msra.mxu0 %v379
    %418 = vmatprep.subr.mxu0 0.0
    %419 = vmatpush1.msra.mxu0 %v380
    %420 = vmatprep.subr.mxu0 0.0
    %421 = vmatpush1.msra.mxu0 %v381
    %422 = vmatprep.subr.mxu0 0.0
    %423 = vmatpush1.msra.mxu0 %v382
    %424 = vmatprep.subr.mxu0 0.0
    %425 = vmatpush1.msra.mxu0 %v383
    %426 = vmatprep.subr.mxu0 0.0
    %427 = vmatpush1.msra.mxu0 %v384
    %428 = vmatprep.subr.mxu0 0.0
    %429 = vmatpush1.msra.mxu0 %v385
    %430 = vmatprep.subr.mxu0 0.0
    %431 = vmatpush1.msra.mxu0 %v386
    %432 = vmatprep.subr.mxu0 0.0
    %433 = vmatpush1.msra.mxu0 %v387
    %434 = vmatprep.subr.mxu0 0.0
    %435 = vmatpush1.msra.mxu0 %v388
    %436 = vmatprep.subr.mxu0 0.0
    %437 = vmatpush1.msra.mxu0 %v389
    %438 = vmatprep.subr.mxu0 0.0
    %439 = vmatpush1.msra.mxu0 %v390
    %440 = vmatprep.subr.mxu0 0.0
    %441 = vmatpush1.msra.mxu0 %v391
    %442 = vmatprep.subr.mxu0 0.0
    %443 = vmatpush1.msra.mxu0 0.0
    %444 = vmatprep.subr.mxu0 0.0
    %445 = vmatpush1.msra.mxu0 0.0
    %446 = vmatprep.subr.mxu0 0.0
    %447 = vmatpush1.msra.mxu0 0.0
    %448 = vmatprep.subr.mxu0 0.0
    %449 = vmatpush1.msra.mxu0 0.0
    %450 = vmatprep.subr.mxu0 0.0
    %451 = vmatpush1.msra.mxu0 0.0
    %452 = vmatprep.subr.mxu0 0.0
    %453 = vmatpush1.msra.mxu0 0.0
    %454 = vmatprep.subr.mxu0 0.0
    %455 = vmatpush1.msra.mxu0 0.0
    %456 = vmatprep.mubr.f32.mxu0 %v262
    %457 = vmatmul.mubr.f32.gmra.mrb[0].mxu0 %v227
    %v458 = vpop.f32.mrb[0].mxu0
    %v459 = vadd.f32 0.0, %v458
    %v460 = vpop.f32.mrb[0].mxu0
    %461 = vmatprep.mubr.f32.mxu0 %v265
    %462 = vmatmul.mubr.f32.gmra.mrb[0].mxu0 %v229
    %v463 = vpop.f32.mrb[0].mxu0
    %v464 = vadd.f32 0.0, %v463
    %v465 = vpop.f32.mrb[0].mxu0
    %466 = vmatprep.mubr.f32.mxu0 %v268
    %467 = vmatmul.mubr.f32.gmra.mrb[0].mxu0 %v231
    %v468 = vpop.f32.mrb[0].mxu0
    %v469 = vadd.f32 0.0, %v468
    %v470 = vpop.f32.mrb[0].mxu0
    %471 = vmatprep.mubr.f32.mxu0 %v271
    %472 = vmatmul.mubr.f32.gmra.mrb[0].mxu0 %v233
    %v473 = vpop.f32.mrb[0].mxu0
    %v474 = vadd.f32 0.0, %v473
    %v475 = vpop.f32.mrb[0].mxu0
    %476 = vdwg.mxu0
    %s477 = scalar_lea.vmem %s4, 64
    %v478 = vld [vmem:[%s477] sm:$0xff]
    %v479 = vld [vmem:[%s477 + $0x8] sm:$0xff]
    %v480 = vld [vmem:[%s477 + $0x10] sm:$0xff]
    %v481 = vld [vmem:[%s477 + $0x18] sm:$0xff]
    %v482 = vld [vmem:[%s477 + $0x20] sm:$0xff]
    %v483 = vld [vmem:[%s477 + $0x28] sm:$0xff]
    %v484 = vld [vmem:[%s477 + $0x30] sm:$0xff]
    %v485 = vld [vmem:[%s477 + $0x38] sm:$0xff]
    %vm486 = vcmask 261120
    %v488 = vsel %vm486, %v478, 0
    %v491 = vsel %vm486, %v479, 0
    %v494 = vsel %vm486, %v480, 0
    %v497 = vsel %vm486, %v481, 0
    %v500 = vsel %vm486, %v482, 0
    %v503 = vsel %vm486, %v483, 0
    %v506 = vsel %vm486, %v484, 0
    %v509 = vsel %vm486, %v485, 0
    %511 = vmatprep.subr.mxu0 0.0
    %512 = vmatpush1.msra.mxu0 %v459
    %513 = vmatprep.subr.mxu0 0.0
    %514 = vmatpush1.msra.mxu0 %v464
    %515 = vmatprep.subr.mxu0 0.0
    %516 = vmatpush1.msra.mxu0 %v469
    %517 = vmatprep.subr.mxu0 0.0
    %518 = vmatpush1.msra.mxu0 %v474
    %519 = vmatprep.subr.mxu0 0.0
    %520 = vmatpush1.msra.mxu0 0.0
    %521 = vmatprep.subr.mxu0 0.0
    %522 = vmatpush1.msra.mxu0 0.0
    %523 = vmatprep.subr.mxu0 0.0
    %524 = vmatpush1.msra.mxu0 0.0
    %525 = vmatprep.subr.mxu0 0.0
    %526 = vmatpush1.msra.mxu0 0.0
    %527 = vmatprep.subr.mxu0 0.0
    %528 = vmatpush1.msra.mxu0 0.0
    %529 = vmatprep.subr.mxu0 0.0
    %530 = vmatpush1.msra.mxu0 0.0
    %531 = vmatprep.subr.mxu0 0.0
    %532 = vmatpush1.msra.mxu0 0.0
    %533 = vmatprep.subr.mxu0 0.0
    %534 = vmatpush1.msra.mxu0 0.0
    %535 = vmatprep.subr.mxu0 0.0
    %536 = vmatpush1.msra.mxu0 0.0
    %537 = vmatprep.subr.mxu0 0.0
    %538 = vmatpush1.msra.mxu0 0.0
    %539 = vmatprep.subr.mxu0 0.0
    %540 = vmatpush1.msra.mxu0 0.0
    %541 = vmatprep.subr.mxu0 0.0
    %542 = vmatpush1.msra.mxu0 0.0
    %543 = vmatprep.subr.mxu0 0.0
    %544 = vmatpush1.msra.mxu0 0.0
    %545 = vmatprep.subr.mxu0 0.0
    %546 = vmatpush1.msra.mxu0 0.0
    %547 = vmatprep.subr.mxu0 0.0
    %548 = vmatpush1.msra.mxu0 0.0
    %549 = vmatprep.subr.mxu0 0.0
    %550 = vmatpush1.msra.mxu0 0.0
    %551 = vmatprep.subr.mxu0 0.0
    %552 = vmatpush1.msra.mxu0 0.0
    %553 = vmatprep.subr.mxu0 0.0
    %554 = vmatpush1.msra.mxu0 0.0
    %555 = vmatprep.subr.mxu0 0.0
    %556 = vmatpush1.msra.mxu0 0.0
    %557 = vmatprep.subr.mxu0 0.0
    %558 = vmatpush1.msra.mxu0 0.0
    %559 = vmatprep.subr.mxu0 0.0
    %560 = vmatpush1.msra.mxu0 0.0
    %561 = vmatprep.subr.mxu0 0.0
    %562 = vmatpush1.msra.mxu0 0.0
    %563 = vmatprep.subr.mxu0 0.0
    %564 = vmatpush1.msra.mxu0 0.0
    %565 = vmatprep.subr.mxu0 0.0
    %566 = vmatpush1.msra.mxu0 0.0
    %567 = vmatprep.subr.mxu0 0.0
    %568 = vmatpush1.msra.mxu0 0.0
    %569 = vmatprep.subr.mxu0 0.0
    %570 = vmatpush1.msra.mxu0 0.0
    %571 = vmatprep.subr.mxu0 0.0
    %572 = vmatpush1.msra.mxu0 0.0
    %573 = vmatprep.subr.mxu0 0.0
    %574 = vmatpush1.msra.mxu0 0.0
    %575 = vmatprep.mubr.f32.mxu0 0.0
    %576 = vmatmul.mubr.f32.gmra.mrb[0].mxu0 %v488
    %v577 = vpop.f32.mrb[0].mxu0
    %v578 = vadd.f32 0.0, %v577
    %v579 = vpop.f32.mrb[0].mxu0
    %580 = vmatprep.mubr.f32.mxu0 0.0
    %581 = vmatmul.mubr.f32.gmra.mrb[0].mxu0 %v491
    %v582 = vpop.f32.mrb[0].mxu0
    %v583 = vadd.f32 0.0, %v582
    %v584 = vpop.f32.mrb[0].mxu0
    %585 = vmatprep.mubr.f32.mxu0 0.0
    %586 = vmatmul.mubr.f32.gmra.mrb[0].mxu0 %v494
    %v587 = vpop.f32.mrb[0].mxu0
    %v588 = vadd.f32 0.0, %v587
    %v589 = vpop.f32.mrb[0].mxu0
    %590 = vmatprep.mubr.f32.mxu0 0.0
    %591 = vmatmul.mubr.f32.gmra.mrb[0].mxu0 %v497
    %v592 = vpop.f32.mrb[0].mxu0
    %v593 = vadd.f32 0.0, %v592
    %v594 = vpop.f32.mrb[0].mxu0
    %595 = vmatprep.mubr.f32.mxu0 0.0
    %596 = vmatmul.mubr.f32.gmra.mrb[0].mxu0 %v500
    %v597 = vpop.f32.mrb[0].mxu0
    %v598 = vadd.f32 0.0, %v597
    %v599 = vpop.f32.mrb[0].mxu0
    %600 = vmatprep.mubr.f32.mxu0 0.0
    %601 = vmatmul.mubr.f32.gmra.mrb[0].mxu0 %v503
    %v602 = vpop.f32.mrb[0].mxu0
    %v603 = vadd.f32 0.0, %v602
    %v604 = vpop.f32.mrb[0].mxu0
    %605 = vmatprep.mubr.f32.mxu0 0.0
    %606 = vmatmul.mubr.f32.gmra.mrb[0].mxu0 %v506
    %v607 = vpop.f32.mrb[0].mxu0
    %v608 = vadd.f32 0.0, %v607
    %v609 = vpop.f32.mrb[0].mxu0
    %610 = vmatprep.mubr.f32.mxu0 0.0
    %611 = vmatmul.mubr.f32.gmra.mrb[0].mxu0 %v509
    %v612 = vpop.f32.mrb[0].mxu0
    %v613 = vadd.f32 0.0, %v612
    %v614 = vpop.f32.mrb[0].mxu0
    %615 = vdwg.mxu0
    %v617 = vsel %vm486, %v358, 0
    %v620 = vsel %vm486, %v359, 0
    %v623 = vsel %vm486, %v360, 0
    %v626 = vsel %vm486, %v361, 0
    %v629 = vsel %vm486, %v362, 0
    %v632 = vsel %vm486, %v363, 0
    %v635 = vsel %vm486, %v364, 0
    %v638 = vsel %vm486, %v365, 0
    %640 = vmatprep.subr.mxu0 0.0
    %641 = vmatpush1.msra.mxu0 %v340
    %642 = vmatprep.subr.mxu0 0.0
    %643 = vmatpush1.msra.mxu0 %v345
    %644 = vmatprep.subr.mxu0 0.0
    %645 = vmatpush1.msra.mxu0 %v350
    %646 = vmatprep.subr.mxu0 0.0
    %647 = vmatpush1.msra.mxu0 %v355
    %648 = vmatprep.subr.mxu0 0.0
    %649 = vmatpush1.msra.mxu0 0.0
    %650 = vmatprep.subr.mxu0 0.0
    %651 = vmatpush1.msra.mxu0 0.0
    %652 = vmatprep.subr.mxu0 0.0
    %653 = vmatpush1.msra.mxu0 0.0
    %654 = vmatprep.subr.mxu0 0.0
    %655 = vmatpush1.msra.mxu0 0.0
    %656 = vmatprep.subr.mxu0 0.0
    %657 = vmatpush1.msra.mxu0 0.0
    %658 = vmatprep.subr.mxu0 0.0
    %659 = vmatpush1.msra.mxu0 0.0
    %660 = vmatprep.subr.mxu0 0.0
    %661 = vmatpush1.msra.mxu0 0.0
    %662 = vmatprep.subr.mxu0 0.0
    %663 = vmatpush1.msra.mxu0 0.0
    %664 = vmatprep.subr.mxu0 0.0
    %665 = vmatpush1.msra.mxu0 0.0
    %666 = vmatprep.subr.mxu0 0.0
    %667 = vmatpush1.msra.mxu0 0.0
    %668 = vmatprep.subr.mxu0 0.0
    %669 = vmatpush1.msra.mxu0 0.0
    %670 = vmatprep.subr.mxu0 0.0
    %671 = vmatpush1.msra.mxu0 0.0
    %672 = vmatprep.subr.mxu0 0.0
    %673 = vmatpush1.msra.mxu0 0.0
    %674 = vmatprep.subr.mxu0 0.0
    %675 = vmatpush1.msra.mxu0 0.0
    %676 = vmatprep.subr.mxu0 0.0
    %677 = vmatpush1.msra.mxu0 0.0
    %678 = vmatprep.subr.mxu0 0.0
    %679 = vmatpush1.msra.mxu0 0.0
    %680 = vmatprep.subr.mxu0 0.0
    %681 = vmatpush1.msra.mxu0 0.0
    %682 = vmatprep.subr.mxu0 0.0
    %683 = vmatpush1.msra.mxu0 0.0
    %684 = vmatprep.subr.mxu0 0.0
    %685 = vmatpush1.msra.mxu0 0.0
    %686 = vmatprep.subr.mxu0 0.0
    %687 = vmatpush1.msra.mxu0 0.0
    %688 = vmatprep.subr.mxu0 0.0
    %689 = vmatpush1.msra.mxu0 0.0
    %690 = vmatprep.subr.mxu0 0.0
    %691 = vmatpush1.msra.mxu0 0.0
    %692 = vmatprep.subr.mxu0 0.0
    %693 = vmatpush1.msra.mxu0 0.0
    %694 = vmatprep.subr.mxu0 0.0
    %695 = vmatpush1.msra.mxu0 0.0
    %696 = vmatprep.subr.mxu0 0.0
    %697 = vmatpush1.msra.mxu0 0.0
    %698 = vmatprep.subr.mxu0 0.0
    %699 = vmatpush1.msra.mxu0 0.0
    %700 = vmatprep.subr.mxu0 0.0
    %701 = vmatpush1.msra.mxu0 0.0
    %702 = vmatprep.subr.mxu0 0.0
    %703 = vmatpush1.msra.mxu0 0.0
    %704 = vmatprep.mubr.f32.mxu0 0.0
    %705 = vmatmul.mubr.f32.gmra.mrb[0].mxu0 %v617
    %v706 = vpop.f32.mrb[0].mxu0
    %v707 = vadd.f32 %v578, %v706
    %v708 = vpop.f32.mrb[0].mxu0
    %709 = vmatprep.mubr.f32.mxu0 0.0
    %710 = vmatmul.mubr.f32.gmra.mrb[0].mxu0 %v620
    %v711 = vpop.f32.mrb[0].mxu0
    %v712 = vadd.f32 %v583, %v711
    %v713 = vpop.f32.mrb[0].mxu0
    %714 = vmatprep.mubr.f32.mxu0 0.0
    %715 = vmatmul.mubr.f32.gmra.mrb[0].mxu0 %v623
    %v716 = vpop.f32.mrb[0].mxu0
    %v717 = vadd.f32 %v588, %v716
    %v718 = vpop.f32.mrb[0].mxu0
    %719 = vmatprep.mubr.f32.mxu0 0.0
    %720 = vmatmul.mubr.f32.gmra.mrb[0].mxu0 %v626
    %v721 = vpop.f32.mrb[0].mxu0
    %v722 = vadd.f32 %v593, %v721
    %v723 = vpop.f32.mrb[0].mxu0
    %724 = vmatprep.mubr.f32.mxu0 0.0
    %725 = vmatmul.mubr.f32.gmra.mrb[0].mxu0 %v629
    %v726 = vpop.f32.mrb[0].mxu0
    %v727 = vadd.f32 %v598, %v726
    %v728 = vpop.f32.mrb[0].mxu0
    %729 = vmatprep.mubr.f32.mxu0 0.0
    %730 = vmatmul.mubr.f32.gmra.mrb[0].mxu0 %v632
    %v731 = vpop.f32.mrb[0].mxu0
    %v732 = vadd.f32 %v603, %v731
    %v733 = vpop.f32.mrb[0].mxu0
    %734 = vmatprep.mubr.f32.mxu0 0.0
    %735 = vmatmul.mubr.f32.gmra.mrb[0].mxu0 %v635
    %v736 = vpop.f32.mrb[0].mxu0
    %v737 = vadd.f32 %v608, %v736
    %v738 = vpop.f32.mrb[0].mxu0
    %739 = vmatprep.mubr.f32.mxu0 0.0
    %740 = vmatmul.mubr.f32.gmra.mrb[0].mxu0 %v638
    %v741 = vpop.f32.mrb[0].mxu0
    %v742 = vadd.f32 %v613, %v741
    %v743 = vpop.f32.mrb[0].mxu0
    %744 = vdwg.mxu0
    %s745 = scalar_lea.vmem [#allocation3], 400
    %v746 = vld [vmem:[%s745] sm:$0xff]
    %v747 = vld [vmem:[%s745 + $0x8] sm:$0xff]
    %v748 = vld [vmem:[%s745 + $0x10] sm:$0xff]
    %v749 = vld [vmem:[%s745 + $0x18] sm:$0xff]
    %v750 = vld [vmem:[%s745 + $0x20] sm:$0xff]
    %v751 = vld [vmem:[%s745 + $0x28] sm:$0xff]
    %v752 = vld [vmem:[%s745 + $0x30] sm:$0xff]
    %v753 = vld [vmem:[%s745 + $0x38] sm:$0xff]
    %v754 = vld [vmem:[%s745 + $0x40] sm:$0xff]
    %v755 = vld [vmem:[%s745 + $0x48] sm:$0xff]
    %v756 = vld [vmem:[%s745 + $0x50] sm:$0xff]
    %v757 = vld [vmem:[%s745 + $0x58] sm:$0xff]
    %v758 = vld [vmem:[%s745 + $0x60] sm:$0xff]
    %v759 = vld [vmem:[%s745 + $0x68] sm:$0xff]
    %v760 = vld [vmem:[%s745 + $0x70] sm:$0xff]
    %v761 = vld [vmem:[%s745 + $0x78] sm:$0xff]
    %v762 = vld [vmem:[%s745 + $0x80] sm:$0xff]
    %v763 = vld [vmem:[%s745 + $0x88] sm:$0xff]
    %v764 = vld [vmem:[%s745 + $0x90] sm:$0xff]
    %v765 = vld [vmem:[%s745 + $0x98] sm:$0xff]
    %v766 = vld [vmem:[%s745 + $0xa0] sm:$0xff]
    %v767 = vld [vmem:[%s745 + $0xa8] sm:$0xff]
    %v768 = vld [vmem:[%s745 + $0xb0] sm:$0xff]
    %v769 = vld [vmem:[%s745 + $0xb8] sm:$0xff]
    %v770 = vld [vmem:[%s745 + $0xc0] sm:$0xff]
    %771 = vmatprep.subr.mxu0 0.0
    %772 = vmatpush1.msra.mxu0 %v746
    %773 = vmatprep.subr.mxu0 0.0
    %774 = vmatpush1.msra.mxu0 %v747
    %775 = vmatprep.subr.mxu0 0.0
    %776 = vmatpush1.msra.mxu0 %v748
    %777 = vmatprep.subr.mxu0 0.0
    %778 = vmatpush1.msra.mxu0 %v749
    %779 = vmatprep.subr.mxu0 0.0
    %780 = vmatpush1.msra.mxu0 %v750
    %781 = vmatprep.subr.mxu0 0.0
    %782 = vmatpush1.msra.mxu0 %v751
    %783 = vmatprep.subr.mxu0 0.0
    %784 = vmatpush1.msra.mxu0 %v752
    %785 = vmatprep.subr.mxu0 0.0
    %786 = vmatpush1.msra.mxu0 %v753
    %787 = vmatprep.subr.mxu0 0.0
    %788 = vmatpush1.msra.mxu0 %v754
    %789 = vmatprep.subr.mxu0 0.0
    %790 = vmatpush1.msra.mxu0 %v755
    %791 = vmatprep.subr.mxu0 0.0
    %792 = vmatpush1.msra.mxu0 %v756
    %793 = vmatprep.subr.mxu0 0.0
    %794 = vmatpush1.msra.mxu0 %v757
    %795 = vmatprep.subr.mxu0 0.0
    %796 = vmatpush1.msra.mxu0 %v758
    %797 = vmatprep.subr.mxu0 0.0
    %798 = vmatpush1.msra.mxu0 %v759
    %799 = vmatprep.subr.mxu0 0.0
    %800 = vmatpush1.msra.mxu0 %v760
    %801 = vmatprep.subr.mxu0 0.0
    %802 = vmatpush1.msra.mxu0 %v761
    %803 = vmatprep.subr.mxu0 0.0
    %804 = vmatpush1.msra.mxu0 %v762
    %805 = vmatprep.subr.mxu0 0.0
    %806 = vmatpush1.msra.mxu0 %v763
    %807 = vmatprep.subr.mxu0 0.0
    %808 = vmatpush1.msra.mxu0 %v764
    %809 = vmatprep.subr.mxu0 0.0
    %810 = vmatpush1.msra.mxu0 %v765
    %811 = vmatprep.subr.mxu0 0.0
    %812 = vmatpush1.msra.mxu0 %v766
    %813 = vmatprep.subr.mxu0 0.0
    %814 = vmatpush1.msra.mxu0 %v767
    %815 = vmatprep.subr.mxu0 0.0
    %816 = vmatpush1.msra.mxu0 %v768
    %817 = vmatprep.subr.mxu0 0.0
    %818 = vmatpush1.msra.mxu0 %v769
    %819 = vmatprep.subr.mxu0 0.0
    %820 = vmatpush1.msra.mxu0 %v770
    %821 = vmatprep.subr.mxu0 0.0
    %822 = vmatpush1.msra.mxu0 0.0
    %823 = vmatprep.subr.mxu0 0.0
    %824 = vmatpush1.msra.mxu0 0.0
    %825 = vmatprep.subr.mxu0 0.0
    %826 = vmatpush1.msra.mxu0 0.0
    %827 = vmatprep.subr.mxu0 0.0
    %828 = vmatpush1.msra.mxu0 0.0
    %829 = vmatprep.subr.mxu0 0.0
    %830 = vmatpush1.msra.mxu0 0.0
    %831 = vmatprep.subr.mxu0 0.0
    %832 = vmatpush1.msra.mxu0 0.0
    %833 = vmatprep.subr.mxu0 0.0
    %834 = vmatpush1.msra.mxu0 0.0
    %835 = vmatprep.mubr.f32.mxu0 %v262
    %836 = vmatmul.mubr.f32.gmra.mrb[0].mxu0 %v227
    %v837 = vpop.f32.mrb[0].mxu0
    %v838 = vadd.f32 0.0, %v837
    %v839 = vpop.f32.mrb[0].mxu0
    %840 = vmatprep.mubr.f32.mxu0 %v265
    %841 = vmatmul.mubr.f32.gmra.mrb[0].mxu0 %v229
    %v842 = vpop.f32.mrb[0].mxu0
    %v843 = vadd.f32 0.0, %v842
    %v844 = vpop.f32.mrb[0].mxu0
    %845 = vmatprep.mubr.f32.mxu0 %v268
    %846 = vmatmul.mubr.f32.gmra.mrb[0].mxu0 %v231
    %v847 = vpop.f32.mrb[0].mxu0
    %v848 = vadd.f32 0.0, %v847
    %v849 = vpop.f32.mrb[0].mxu0
    %850 = vmatprep.mubr.f32.mxu0 %v271
    %851 = vmatmul.mubr.f32.gmra.mrb[0].mxu0 %v233
    %v852 = vpop.f32.mrb[0].mxu0
    %v853 = vadd.f32 0.0, %v852
    %v854 = vpop.f32.mrb[0].mxu0
    %855 = vdwg.mxu0
    %s856 = scalar_lea.vmem %s4, 128
    %v857 = vld [vmem:[%s856] sm:$0xff]
    %v858 = vld [vmem:[%s856 + $0x8] sm:$0xff]
    %v859 = vld [vmem:[%s856 + $0x10] sm:$0xff]
    %v860 = vld [vmem:[%s856 + $0x18] sm:$0xff]
    %v861 = vld [vmem:[%s856 + $0x20] sm:$0xff]
    %v862 = vld [vmem:[%s856 + $0x28] sm:$0xff]
    %v863 = vld [vmem:[%s856 + $0x30] sm:$0xff]
    %v864 = vld [vmem:[%s856 + $0x38] sm:$0xff]
    %v866 = vsel %vm486, %v857, 0
    %v869 = vsel %vm486, %v858, 0
    %v872 = vsel %vm486, %v859, 0
    %v875 = vsel %vm486, %v860, 0
    %v878 = vsel %vm486, %v861, 0
    %v881 = vsel %vm486, %v862, 0
    %v884 = vsel %vm486, %v863, 0
    %v887 = vsel %vm486, %v864, 0
    %889 = vmatprep.subr.mxu0 0.0
    %890 = vmatpush1.msra.mxu0 %v838
    %891 = vmatprep.subr.mxu0 0.0
    %892 = vmatpush1.msra.mxu0 %v843
    %893 = vmatprep.subr.mxu0 0.0
    %894 = vmatpush1.msra.mxu0 %v848
    %895 = vmatprep.subr.mxu0 0.0
    %896 = vmatpush1.msra.mxu0 %v853
    %897 = vmatprep.subr.mxu0 0.0
    %898 = vmatpush1.msra.mxu0 0.0
    %899 = vmatprep.subr.mxu0 0.0
    %900 = vmatpush1.msra.mxu0 0.0
    %901 = vmatprep.subr.mxu0 0.0
    %902 = vmatpush1.msra.mxu0 0.0
    %903 = vmatprep.subr.mxu0 0.0
    %904 = vmatpush1.msra.mxu0 0.0
    %905 = vmatprep.subr.mxu0 0.0
    %906 = vmatpush1.msra.mxu0 0.0
    %907 = vmatprep.subr.mxu0 0.0
    %908 = vmatpush1.msra.mxu0 0.0
    %909 = vmatprep.subr.mxu0 0.0
    %910 = vmatpush1.msra.mxu0 0.0
    %911 = vmatprep.subr.mxu0 0.0
    %912 = vmatpush1.msra.mxu0 0.0
    %913 = vmatprep.subr.mxu0 0.0
    %914 = vmatpush1.msra.mxu0 0.0
    %915 = vmatprep.subr.mxu0 0.0
    %916 = vmatpush1.msra.mxu0 0.0
    %917 = vmatprep.subr.mxu0 0.0
    %918 = vmatpush1.msra.mxu0 0.0
    %919 = vmatprep.subr.mxu0 0.0
    %920 = vmatpush1.msra.mxu0 0.0
    %921 = vmatprep.subr.mxu0 0.0
    %922 = vmatpush1.msra.mxu0 0.0
    %923 = vmatprep.subr.mxu0 0.0
    %924 = vmatpush1.msra.mxu0 0.0
    %925 = vmatprep.subr.mxu0 0.0
    %926 = vmatpush1.msra.mxu0 0.0
    %927 = vmatprep.subr.mxu0 0.0
    %928 = vmatpush1.msra.mxu0 0.0
    %929 = vmatprep.subr.mxu0 0.0
    %930 = vmatpush1.msra.mxu0 0.0
    %931 = vmatprep.subr.mxu0 0.0
    %932 = vmatpush1.msra.mxu0 0.0
    %933 = vmatprep.subr.mxu0 0.0
    %934 = vmatpush1.msra.mxu0 0.0
    %935 = vmatprep.subr.mxu0 0.0
    %936 = vmatpush1.msra.mxu0 0.0
    %937 = vmatprep.subr.mxu0 0.0
    %938 = vmatpush1.msra.mxu0 0.0
    %939 = vmatprep.subr.mxu0 0.0
    %940 = vmatpush1.msra.mxu0 0.0
    %941 = vmatprep.subr.mxu0 0.0
    %942 = vmatpush1.msra.mxu0 0.0
    %943 = vmatprep.subr.mxu0 0.0
    %944 = vmatpush1.msra.mxu0 0.0
    %945 = vmatprep.subr.mxu0 0.0
    %946 = vmatpush1.msra.mxu0 0.0
    %947 = vmatprep.subr.mxu0 0.0
    %948 = vmatpush1.msra.mxu0 0.0
    %949 = vmatprep.subr.mxu0 0.0
    %950 = vmatpush1.msra.mxu0 0.0
    %951 = vmatprep.subr.mxu0 0.0
    %952 = vmatpush1.msra.mxu0 0.0
    %953 = vmatprep.mubr.f32.mxu0 0.0
    %954 = vmatmul.mubr.f32.gmra.mrb[0].mxu0 %v866
    %v955 = vpop.f32.mrb[0].mxu0
    %v956 = vadd.f32 0.0, %v955
    %v957 = vpop.f32.mrb[0].mxu0
    %958 = vmatprep.mubr.f32.mxu0 0.0
    %959 = vmatmul.mubr.f32.gmra.mrb[0].mxu0 %v869
    %v960 = vpop.f32.mrb[0].mxu0
    %v961 = vadd.f32 0.0, %v960
    %v962 = vpop.f32.mrb[0].mxu0
    %963 = vmatprep.mubr.f32.mxu0 0.0
    %964 = vmatmul.mubr.f32.gmra.mrb[0].mxu0 %v872
    %v965 = vpop.f32.mrb[0].mxu0
    %v966 = vadd.f32 0.0, %v965
    %v967 = vpop.f32.mrb[0].mxu0
    %968 = vmatprep.mubr.f32.mxu0 0.0
    %969 = vmatmul.mubr.f32.gmra.mrb[0].mxu0 %v875
    %v970 = vpop.f32.mrb[0].mxu0
    %v971 = vadd.f32 0.0, %v970
    %v972 = vpop.f32.mrb[0].mxu0
    %973 = vmatprep.mubr.f32.mxu0 0.0
    %974 = vmatmul.mubr.f32.gmra.mrb[0].mxu0 %v878
    %v975 = vpop.f32.mrb[0].mxu0
    %v976 = vadd.f32 0.0, %v975
    %v977 = vpop.f32.mrb[0].mxu0
    %978 = vmatprep.mubr.f32.mxu0 0.0
    %979 = vmatmul.mubr.f32.gmra.mrb[0].mxu0 %v881
    %v980 = vpop.f32.mrb[0].mxu0
    %v981 = vadd.f32 0.0, %v980
    %v982 = vpop.f32.mrb[0].mxu0
    %983 = vmatprep.mubr.f32.mxu0 0.0
    %984 = vmatmul.mubr.f32.gmra.mrb[0].mxu0 %v884
    %v985 = vpop.f32.mrb[0].mxu0
    %v986 = vadd.f32 0.0, %v985
    %v987 = vpop.f32.mrb[0].mxu0
    %988 = vmatprep.mubr.f32.mxu0 0.0
    %989 = vmatmul.mubr.f32.gmra.mrb[0].mxu0 %v887
    %v990 = vpop.f32.mrb[0].mxu0
    %v991 = vadd.f32 0.0, %v990
    %v992 = vpop.f32.mrb[0].mxu0
    %993 = vdwg.mxu0
    %v994 = vadd.f32 %v707, %v956
    %v995 = vadd.f32 %v712, %v961
    %v996 = vadd.f32 %v717, %v966
    %v997 = vadd.f32 %v722, %v971
    %v998 = vadd.f32 %v727, %v976
    %v999 = vadd.f32 %v732, %v981
    %v1000 = vadd.f32 %v737, %v986
    %v1001 = vadd.f32 %v742, %v991
    %v1002 = vld [vmem:[%s5] sm:$0xff]
    %v1003 = vld [vmem:[%s5 + $0x8] sm:$0xff]
    %v1004 = vld [vmem:[%s5 + $0x10] sm:$0xff]
    %v1005 = vld [vmem:[%s5 + $0x18] sm:$0xff]
    %v1006 = vld [vmem:[%s5 + $0x20] sm:$0xff]
    %v1007 = vld [vmem:[%s5 + $0x28] sm:$0xff]
    %v1008 = vld [vmem:[%s5 + $0x30] sm:$0xff]
    %v1009 = vld [vmem:[%s5 + $0x38] sm:$0xff]
    %1011 = vset.pattern.permute.xlu0 0
    %1012 = vperm.xlu0 %1011, %v1002
    %v1013 = vpop.permute.xlu0 %1012
    %1016 = vset.pattern.permute.xlu0 0
    %1017 = vperm.xlu0 %1016, %v1003
    %v1018 = vpop.permute.xlu0 %1017
    %1021 = vset.pattern.permute.xlu0 0
    %1022 = vperm.xlu0 %1021, %v1004
    %v1023 = vpop.permute.xlu0 %1022
    %1026 = vset.pattern.permute.xlu0 0
    %1027 = vperm.xlu0 %1026, %v1005
    %v1028 = vpop.permute.xlu0 %1027
    %1031 = vset.pattern.permute.xlu0 0
    %1032 = vperm.xlu0 %1031, %v1006
    %v1033 = vpop.permute.xlu0 %1032
    %1036 = vset.pattern.permute.xlu0 0
    %1037 = vperm.xlu0 %1036, %v1007
    %v1038 = vpop.permute.xlu0 %1037
    %1041 = vset.pattern.permute.xlu0 0
    %1042 = vperm.xlu0 %1041, %v1008
    %v1043 = vpop.permute.xlu0 %1042
    %1046 = vset.pattern.permute.xlu0 0
    %1047 = vperm.xlu0 %1046, %v1009
    %v1048 = vpop.permute.xlu0 %1047
    %v1050 = vadd.f32 %v994, %v1013
    %v1051 = vadd.f32 %v995, %v1018
    %v1052 = vadd.f32 %v996, %v1023
    %v1053 = vadd.f32 %v997, %v1028
    %v1054 = vadd.f32 %v998, %v1033
    %v1055 = vadd.f32 %v999, %v1038
    %v1056 = vadd.f32 %v1000, %v1043
    %v1057 = vadd.f32 %v1001, %v1048
    %v1058 = vmax.f32 %v1050, 0.0
    %v1059 = vmax.f32 %v1051, 0.0
    %v1060 = vmax.f32 %v1052, 0.0
    %v1061 = vmax.f32 %v1053, 0.0
    %v1062 = vmax.f32 %v1054, 0.0
    %v1063 = vmax.f32 %v1055, 0.0
    %v1064 = vmax.f32 %v1056, 0.0
    %v1065 = vmax.f32 %v1057, 0.0
    %v1066 = vld [vmem:[%s6] sm:$0xff]
    %v1067 = vld [vmem:[%s6 + $0x8] sm:$0xf]
    %vm1068 = vcmask 408576
    %v1070 = vsel %vm1068, %v1066, 0
    %v1073 = vsel %vm1068, %v1067, 0
    %v1076 = vsel %vm1068, %v1058, 0
    %v1079 = vsel %vm1068, %v1059, 0
    %v1082 = vsel %vm1068, %v1060, 0
    %v1085 = vsel %vm1068, %v1061, 0
    %v1088 = vsel %vm1068, %v1062, 0
    %v1091 = vsel %vm1068, %v1063, 0
    %v1094 = vsel %vm1068, %v1064, 0
    %v1097 = vsel %vm1068, %v1065, 0
    %1099 = vmatprep.subr.mxu0 0.0
    %1100 = vmatpush1.xpose.msra.mxu0 %v1076
    %1101 = vmatprep.subr.mxu0 0.0
    %1102 = vmatpush1.xpose.msra.mxu0 %v1079
    %1103 = vmatprep.subr.mxu0 0.0
    %1104 = vmatpush1.xpose.msra.mxu0 %v1082
    %1105 = vmatprep.subr.mxu0 0.0
    %1106 = vmatpush1.xpose.msra.mxu0 %v1085
    %1107 = vmatprep.subr.mxu0 0.0
    %1108 = vmatpush1.xpose.msra.mxu0 %v1088
    %1109 = vmatprep.subr.mxu0 0.0
    %1110 = vmatpush1.xpose.msra.mxu0 %v1091
    %1111 = vmatprep.subr.mxu0 0.0
    %1112 = vmatpush1.xpose.msra.mxu0 %v1094
    %1113 = vmatprep.subr.mxu0 0.0
    %1114 = vmatpush1.xpose.msra.mxu0 %v1097
    %1115 = vmatprep.subr.mxu0 0.0
    %1116 = vmatpush1.xpose.msra.mxu0 0.0
    %1117 = vmatprep.subr.mxu0 0.0
    %1118 = vmatpush1.xpose.msra.mxu0 0.0
    %1119 = vmatprep.subr.mxu0 0.0
    %1120 = vmatpush1.xpose.msra.mxu0 0.0
    %1121 = vmatprep.subr.mxu0 0.0
    %1122 = vmatpush1.xpose.msra.mxu0 0.0
    %1123 = vmatprep.subr.mxu0 0.0
    %1124 = vmatpush1.xpose.msra.mxu0 0.0
    %1125 = vmatprep.subr.mxu0 0.0
    %1126 = vmatpush1.xpose.msra.mxu0 0.0
    %1127 = vmatprep.subr.mxu0 0.0
    %1128 = vmatpush1.xpose.msra.mxu0 0.0
    %1129 = vmatprep.subr.mxu0 0.0
    %1130 = vmatpush1.xpose.msra.mxu0 0.0
    %1131 = vmatprep.subr.mxu0 0.0
    %1132 = vmatpush1.xpose.msra.mxu0 0.0
    %1133 = vmatprep.subr.mxu0 0.0
    %1134 = vmatpush1.xpose.msra.mxu0 0.0
    %1135 = vmatprep.subr.mxu0 0.0
    %1136 = vmatpush1.xpose.msra.mxu0 0.0
    %1137 = vmatprep.subr.mxu0 0.0
    %1138 = vmatpush1.xpose.msra.mxu0 0.0
    %1139 = vmatprep.subr.mxu0 0.0
    %1140 = vmatpush1.xpose.msra.mxu0 0.0
    %1141 = vmatprep.subr.mxu0 0.0
    %1142 = vmatpush1.xpose.msra.mxu0 0.0
    %1143 = vmatprep.subr.mxu0 0.0
    %1144 = vmatpush1.xpose.msra.mxu0 0.0
    %1145 = vmatprep.subr.mxu0 0.0
    %1146 = vmatpush1.xpose.msra.mxu0 0.0
    %1147 = vmatprep.subr.mxu0 0.0
    %1148 = vmatpush1.xpose.msra.mxu0 0.0
    %1149 = vmatprep.subr.mxu0 0.0
    %1150 = vmatpush1.xpose.msra.mxu0 0.0
    %1151 = vmatprep.subr.mxu0 0.0
    %1152 = vmatpush1.xpose.msra.mxu0 0.0
    %1153 = vmatprep.subr.mxu0 0.0
    %1154 = vmatpush1.xpose.msra.mxu0 0.0
    %1155 = vmatprep.subr.mxu0 0.0
    %1156 = vmatpush1.xpose.msra.mxu0 0.0
    %1157 = vmatprep.subr.mxu0 0.0
    %1158 = vmatpush1.xpose.msra.mxu0 0.0
    %1159 = vmatprep.subr.mxu0 0.0
    %1160 = vmatpush1.xpose.msra.mxu0 0.0
    %1161 = vmatprep.subr.mxu0 0.0
    %1162 = vmatpush1.xpose.msra.mxu0 0.0
    %1163 = vmatprep.mubr.f32.mxu0 0.0
    %1164 = vmatmul.mubr.f32.gmra.mrb[0].mxu0 %v1070
    %v1165 = vpop.f32.mrb[0].mxu0
    %v1166 = vadd.f32 0.0, %v1165
    %v1167 = vpop.f32.mrb[0].mxu0
    %1168 = vmatprep.mubr.f32.mxu0 0.0
    %1169 = vmatmul.mubr.f32.gmra.mrb[0].mxu0 %v1073
    %v1170 = vpop.f32.mrb[0].mxu0
    %v1171 = vadd.f32 0.0, %v1170
    %v1172 = vpop.f32.mrb[0].mxu0
    %1173 = vdwg.mxu0
    %vm1174 = vcmask 517120
    %1175 = vst.msk [vmem:[#allocation2] sm:$0x3] %vm1174, %v1166
    %v1178 = vunpack.c.l.s4 1983009808
    %v1179 = vunpack.c.0.s8 %v1178
    %v1180 = vlaneseq
    %v1181 = vshrl.u32 %v1180, 7
    %v1182 = vsub.s32 %v1179, %v1181
    %v1183 = vrot.slane %v1166, %v1182
    %v1184 = vcombine.high %v1183, %v1183
    %1185 = vrot.lane.b32.xlu0 %v1184, 64
    %v1186 = vpop.permute.xlu0 %1185
    %vm1188 = vcmask 1041920
    %1189 = vst.msk [vmem:[#allocation2] sm:$0x3] %vm1188, %v1186
    %v1190 = vcombine.high %v1166, %v1166
    %v1192 = vunpack.c.l.s4 1983009808
    %v1193 = vunpack.c.0.s8 %v1192
    %v1194 = vlaneseq
    %v1195 = vshrl.u32 %v1194, 7
    %v1196 = vsub.s32 %v1193, %v1195
    %v1197 = vrot.slane %v1190, %v1196
    %1199 = vst.msk [vmem:[#allocation2 + $0x2] sm:$0x3] %vm1174, %v1197
    %v1200 = vcombine.high %v1197, %v1197
    %1201 = vrot.lane.b32.xlu0 %v1200, 64
    %v1202 = vpop.permute.xlu0 %1201
    %1204 = vst.msk [vmem:[#allocation2 + $0x2] sm:$0x3] %vm1188, %v1202
    %1205 = vst.msk [vmem:[#allocation2 + $0x4] sm:$0x3] %vm1174, %v1171
    %v1208 = vunpack.c.l.s4 1983009808
    %v1209 = vunpack.c.0.s8 %v1208
    %v1210 = vlaneseq
    %v1211 = vshrl.u32 %v1210, 7
    %v1212 = vsub.s32 %v1209, %v1211
    %v1213 = vrot.slane %v1171, %v1212
    %v1214 = vcombine.high %v1213, %v1213
    %1215 = vrot.lane.b32.xlu0 %v1214, 64
    %v1216 = vpop.permute.xlu0 %1215
    %1218 = vst.msk [vmem:[#allocation2 + $0x4] sm:$0x3] %vm1188, %v1216
    %v1219 = vld [vmem:[#allocation2] sm:$0x3f]
    %v1220 = vld [vmem:[#allocation6] sm:$0xff]
    %v1221 = vld [vmem:[#allocation6 + $0x8] sm:$0xff]
    %v1222 = vld [vmem:[#allocation6 + $0x10] sm:$0xff]
    %v1223 = vld [vmem:[#allocation6 + $0x18] sm:$0xff]
    %v1224 = vld [vmem:[#allocation6 + $0x20] sm:$0xff]
    %v1225 = vld [vmem:[#allocation6 + $0x28] sm:$0xff]
    %v1226 = vld [vmem:[#allocation6 + $0x30] sm:$0xff]
    %v1227 = vld [vmem:[#allocation6 + $0x38] sm:$0xff]
    %v1228 = vld [vmem:[#allocation6 + $0x40] sm:$0xff]
    %v1229 = vld [vmem:[#allocation6 + $0x48] sm:$0xff]
    %v1230 = vld [vmem:[#allocation6 + $0x50] sm:$0xff]
    %v1231 = vld [vmem:[#allocation6 + $0x58] sm:$0xff]
    %v1232 = vld [vmem:[#allocation6 + $0x60] sm:$0xff]
    %v1233 = vld [vmem:[#allocation6 + $0x68] sm:$0xff]
    %v1234 = vld [vmem:[#allocation6 + $0x70] sm:$0xff]
    %v1235 = vld [vmem:[#allocation6 + $0x78] sm:$0xff]
    %v1236 = vld [vmem:[#allocation6 + $0x80] sm:$0xff]
    %v1237 = vld [vmem:[#allocation6 + $0x88] sm:$0xff]
    %v1238 = vld [vmem:[#allocation6 + $0x90] sm:$0xff]
    %v1239 = vld [vmem:[#allocation6 + $0x98] sm:$0xff]
    %v1240 = vld [vmem:[#allocation6 + $0xa0] sm:$0xff]
    %v1241 = vld [vmem:[#allocation6 + $0xa8] sm:$0xff]
    %v1242 = vld [vmem:[#allocation6 + $0xb0] sm:$0xff]
    %v1243 = vld [vmem:[#allocation6 + $0xb8] sm:$0xff]
    %v1244 = vld [vmem:[#allocation6 + $0xc0] sm:$0xff]
    %v1245 = vld [vmem:[#allocation6 + $0xc8] sm:$0xff]
    %v1246 = vld [vmem:[#allocation6 + $0xd0] sm:$0xff]
    %v1247 = vld [vmem:[#allocation6 + $0xd8] sm:$0xff]
    %v1248 = vld [vmem:[#allocation6 + $0xe0] sm:$0xff]
    %v1249 = vld [vmem:[#allocation6 + $0xe8] sm:$0xff]
    %v1250 = vld [vmem:[#allocation6 + $0xf0] sm:$0xff]
    %v1251 = vld [vmem:[#allocation6 + $0xf8] sm:$0xff]
    %v1252 = vld [vmem:[#allocation6 + $0x100] sm:$0xff]
    %v1253 = vld [vmem:[#allocation6 + $0x108] sm:$0xff]
    %v1254 = vld [vmem:[#allocation6 + $0x110] sm:$0xff]
    %v1255 = vld [vmem:[#allocation6 + $0x118] sm:$0xff]
    %v1256 = vld [vmem:[#allocation6 + $0x120] sm:$0xff]
    %v1257 = vld [vmem:[#allocation6 + $0x128] sm:$0xff]
    %v1258 = vld [vmem:[#allocation6 + $0x130] sm:$0xff]
    %v1259 = vld [vmem:[#allocation6 + $0x138] sm:$0xff]
    %v1260 = vld [vmem:[#allocation6 + $0x140] sm:$0xff]
    %v1261 = vld [vmem:[#allocation6 + $0x148] sm:$0xff]
    %v1262 = vld [vmem:[#allocation6 + $0x150] sm:$0xff]
    %v1263 = vld [vmem:[#allocation6 + $0x158] sm:$0xff]
    %v1264 = vld [vmem:[#allocation6 + $0x160] sm:$0xff]
    %v1265 = vld [vmem:[#allocation6 + $0x168] sm:$0xff]
    %v1266 = vld [vmem:[#allocation6 + $0x170] sm:$0xff]
    %v1267 = vld [vmem:[#allocation6 + $0x178] sm:$0xff]
    %v1268 = vld [vmem:[#allocation6 + $0x180] sm:$0xff]
    %v1269 = vld [vmem:[#allocation6 + $0x188] sm:$0xff]
    %v1270 = vld [vmem:[#allocation6 + $0x190] sm:$0xff]
    %v1271 = vld [vmem:[#allocation6 + $0x198] sm:$0xff]
    %v1272 = vld [vmem:[#allocation6 + $0x1a0] sm:$0xff]
    %v1273 = vld [vmem:[#allocation6 + $0x1a8] sm:$0xff]
    %v1274 = vld [vmem:[#allocation6 + $0x1b0] sm:$0xff]
    %v1275 = vld [vmem:[#allocation6 + $0x1b8] sm:$0xff]
    %v1276 = vld [vmem:[#allocation6 + $0x1c0] sm:$0xff]
    %v1277 = vld [vmem:[#allocation6 + $0x1c8] sm:$0xff]
    %v1278 = vld [vmem:[#allocation6 + $0x1d0] sm:$0xff]
    %v1279 = vld [vmem:[#allocation6 + $0x1d8] sm:$0xff]
    %v1280 = vld [vmem:[#allocation6 + $0x1e0] sm:$0xff]
    %v1281 = vld [vmem:[#allocation6 + $0x1e8] sm:$0xff]
    %v1282 = vld [vmem:[#allocation6 + $0x1f0] sm:$0xff]
    %v1283 = vld [vmem:[#allocation6 + $0x1f8] sm:$0xff]
    %v1284 = vld [vmem:[#allocation6 + $0x200] sm:$0xff]
    %v1285 = vld [vmem:[#allocation6 + $0x208] sm:$0xff]
    %v1286 = vld [vmem:[#allocation6 + $0x210] sm:$0xff]
    %v1287 = vld [vmem:[#allocation6 + $0x218] sm:$0xff]
    %v1288 = vld [vmem:[#allocation6 + $0x220] sm:$0xff]
    %v1289 = vld [vmem:[#allocation6 + $0x228] sm:$0xff]
    %v1290 = vld [vmem:[#allocation6 + $0x230] sm:$0xff]
    %v1291 = vld [vmem:[#allocation6 + $0x238] sm:$0xff]
    %v1292 = vld [vmem:[#allocation6 + $0x240] sm:$0xff]
    %v1293 = vld [vmem:[#allocation6 + $0x248] sm:$0xff]
    %v1294 = vld [vmem:[#allocation6 + $0x250] sm:$0xff]
    %v1295 = vld [vmem:[#allocation6 + $0x258] sm:$0xff]
    %v1296 = vld [vmem:[#allocation6 + $0x260] sm:$0xff]
    %v1297 = vld [vmem:[#allocation6 + $0x268] sm:$0xff]
    %v1298 = vld [vmem:[#allocation6 + $0x270] sm:$0xff]
    %v1299 = vld [vmem:[#allocation6 + $0x278] sm:$0xff]
    %v1300 = vld [vmem:[#allocation6 + $0x280] sm:$0xff]
    %v1301 = vld [vmem:[#allocation6 + $0x288] sm:$0xff]
    %v1302 = vld [vmem:[#allocation6 + $0x290] sm:$0xff]
    %v1303 = vld [vmem:[#allocation6 + $0x298] sm:$0xff]
    %v1304 = vld [vmem:[#allocation6 + $0x2a0] sm:$0xff]
    %v1305 = vld [vmem:[#allocation6 + $0x2a8] sm:$0xff]
    %v1306 = vld [vmem:[#allocation6 + $0x2b0] sm:$0xff]
    %v1307 = vld [vmem:[#allocation6 + $0x2b8] sm:$0xff]
    %v1308 = vld [vmem:[#allocation6 + $0x2c0] sm:$0xff]
    %v1309 = vld [vmem:[#allocation6 + $0x2c8] sm:$0xff]
    %v1310 = vld [vmem:[#allocation6 + $0x2d0] sm:$0xff]
    %v1311 = vld [vmem:[#allocation6 + $0x2d8] sm:$0xff]
    %v1312 = vld [vmem:[#allocation6 + $0x2e0] sm:$0xff]
    %v1313 = vld [vmem:[#allocation6 + $0x2e8] sm:$0xff]
    %v1314 = vld [vmem:[#allocation6 + $0x2f0] sm:$0xff]
    %v1315 = vld [vmem:[#allocation6 + $0x2f8] sm:$0xff]
    %v1316 = vld [vmem:[%s8] sm:$0x3]
    %v1318 = vlaneseq
    %v1319 = vshrl.u32 %v1318, 7
    %v1320 = vsub.s32 0, %v1319
    %v1321 = vrot.slane %v1316, %v1320
    %v1322 = vlaneseq
    %v1323 = vshrl.u32 %v1322, 7
    %v1324 = vsub.s32 1, %v1323
    %v1325 = vrot.slane %v1316, %v1324
    %v1329 = vcombine.high %v1219, %v1219
    %v1331 = vunpack.c.l.s4 1983009808
    %v1332 = vunpack.c.0.s8 %v1331
    %v1333 = vlaneseq
    %v1334 = vshrl.u32 %v1333, 7
    %v1335 = vsub.s32 %v1332, %v1334
    %v1336 = vrot.slane %v1219, %v1335
    %v1338 = vunpack.c.l.s4 1983009808
    %v1339 = vunpack.c.0.s8 %v1338
    %v1340 = vlaneseq
    %v1341 = vshrl.u32 %v1340, 7
    %v1342 = vsub.s32 %v1339, %v1341
    %v1343 = vrot.slane %v1329, %v1342
    %v1344 = vcombine.high %v1336, %v1336
    %1348 = vmatprep.subr.mxu0 %v1221
    %1349 = vmatpush1.msra.mxu0 %v1220
    %1350 = vmatprep.subr.mxu0 %v1223
    %1351 = vmatpush1.msra.mxu0 %v1222
    %1352 = vmatprep.subr.mxu0 %v1225
    %1353 = vmatpush1.msra.mxu0 %v1224
    %1354 = vmatprep.subr.mxu0 %v1227
    %1355 = vmatpush1.msra.mxu0 %v1226
    %1356 = vmatprep.subr.mxu0 %v1229
    %1357 = vmatpush1.msra.mxu0 %v1228
    %1358 = vmatprep.subr.mxu0 %v1231
    %1359 = vmatpush1.msra.mxu0 %v1230
    %1360 = vmatprep.subr.mxu0 %v1233
    %1361 = vmatpush1.msra.mxu0 %v1232
    %1362 = vmatprep.subr.mxu0 %v1235
    %1363 = vmatpush1.msra.mxu0 %v1234
    %1364 = vmatprep.subr.mxu0 %v1237
    %1365 = vmatpush1.msra.mxu0 %v1236
    %1366 = vmatprep.subr.mxu0 %v1239
    %1367 = vmatpush1.msra.mxu0 %v1238
    %1368 = vmatprep.subr.mxu0 %v1241
    %1369 = vmatpush1.msra.mxu0 %v1240
    %1370 = vmatprep.subr.mxu0 %v1243
    %1371 = vmatpush1.msra.mxu0 %v1242
    %1372 = vmatprep.subr.mxu0 %v1245
    %1373 = vmatpush1.msra.mxu0 %v1244
    %1374 = vmatprep.subr.mxu0 %v1247
    %1375 = vmatpush1.msra.mxu0 %v1246
    %1376 = vmatprep.subr.mxu0 %v1249
    %1377 = vmatpush1.msra.mxu0 %v1248
    %1378 = vmatprep.subr.mxu0 %v1251
    %1379 = vmatpush1.msra.mxu0 %v1250
    %1380 = vmatprep.subr.mxu0 %v1253
    %1381 = vmatpush1.msra.mxu0 %v1252
    %1382 = vmatprep.subr.mxu0 %v1255
    %1383 = vmatpush1.msra.mxu0 %v1254
    %1384 = vmatprep.subr.mxu0 %v1257
    %1385 = vmatpush1.msra.mxu0 %v1256
    %1386 = vmatprep.subr.mxu0 %v1259
    %1387 = vmatpush1.msra.mxu0 %v1258
    %1388 = vmatprep.subr.mxu0 %v1261
    %1389 = vmatpush1.msra.mxu0 %v1260
    %1390 = vmatprep.subr.mxu0 %v1263
    %1391 = vmatpush1.msra.mxu0 %v1262
    %1392 = vmatprep.subr.mxu0 %v1265
    %1393 = vmatpush1.msra.mxu0 %v1264
    %1394 = vmatprep.subr.mxu0 %v1267
    %1395 = vmatpush1.msra.mxu0 %v1266
    %1396 = vmatprep.subr.mxu0 %v1269
    %1397 = vmatpush1.msra.mxu0 %v1268
    %1398 = vmatprep.subr.mxu0 %v1271
    %1399 = vmatpush1.msra.mxu0 %v1270
    %1400 = vmatprep.subr.mxu0 %v1273
    %1401 = vmatpush1.msra.mxu0 %v1272
    %1402 = vmatprep.subr.mxu0 %v1275
    %1403 = vmatpush1.msra.mxu0 %v1274
    %1404 = vmatprep.subr.mxu0 %v1277
    %1405 = vmatpush1.msra.mxu0 %v1276
    %1406 = vmatprep.subr.mxu0 %v1279
    %1407 = vmatpush1.msra.mxu0 %v1278
    %1408 = vmatprep.subr.mxu0 %v1281
    %1409 = vmatpush1.msra.mxu0 %v1280
    %1410 = vmatprep.subr.mxu0 %v1283
    %1411 = vmatpush1.msra.mxu0 %v1282
    %1412 = vmatprep.mubr.f32.mxu0 %v1344
    %1413 = vmatmul.mubr.f32.gmra.mrb[0].mxu0 %v1336
    %v1414 = vpop.f32.mrb[0].mxu0
    %v1415 = vadd.f32 %v1321, %v1414
    %v1416 = vpop.f32.mrb[0].mxu0
    %v1417 = vadd.f32 %v1325, %v1416
    %1418 = vdwg.mxu0
    %1419 = vmatprep.subr.mxu0 %v1285
    %1420 = vmatpush1.msra.mxu0 %v1284
    %1421 = vmatprep.subr.mxu0 %v1287
    %1422 = vmatpush1.msra.mxu0 %v1286
    %1423 = vmatprep.subr.mxu0 %v1289
    %1424 = vmatpush1.msra.mxu0 %v1288
    %1425 = vmatprep.subr.mxu0 %v1291
    %1426 = vmatpush1.msra.mxu0 %v1290
    %1427 = vmatprep.subr.mxu0 %v1293
    %1428 = vmatpush1.msra.mxu0 %v1292
    %1429 = vmatprep.subr.mxu0 %v1295
    %1430 = vmatpush1.msra.mxu0 %v1294
    %1431 = vmatprep.subr.mxu0 %v1297
    %1432 = vmatpush1.msra.mxu0 %v1296
    %1433 = vmatprep.subr.mxu0 %v1299
    %1434 = vmatpush1.msra.mxu0 %v1298
    %1435 = vmatprep.subr.mxu0 %v1301
    %1436 = vmatpush1.msra.mxu0 %v1300
    %1437 = vmatprep.subr.mxu0 %v1303
    %1438 = vmatpush1.msra.mxu0 %v1302
    %1439 = vmatprep.subr.mxu0 %v1305
    %1440 = vmatpush1.msra.mxu0 %v1304
    %1441 = vmatprep.subr.mxu0 %v1307
    %1442 = vmatpush1.msra.mxu0 %v1306
    %1443 = vmatprep.subr.mxu0 %v1309
    %1444 = vmatpush1.msra.mxu0 %v1308
    %1445 = vmatprep.subr.mxu0 %v1311
    %1446 = vmatpush1.msra.mxu0 %v1310
    %1447 = vmatprep.subr.mxu0 %v1313
    %1448 = vmatpush1.msra.mxu0 %v1312
    %1449 = vmatprep.subr.mxu0 %v1315
    %1450 = vmatpush1.msra.mxu0 %v1314
    %1451 = vmatprep.subr.mxu0 0.0
    %1452 = vmatpush1.msra.mxu0 0.0
    %1453 = vmatprep.subr.mxu0 0.0
    %1454 = vmatpush1.msra.mxu0 0.0
    %1455 = vmatprep.subr.mxu0 0.0
    %1456 = vmatpush1.msra.mxu0 0.0
    %1457 = vmatprep.subr.mxu0 0.0
    %1458 = vmatpush1.msra.mxu0 0.0
    %1459 = vmatprep.subr.mxu0 0.0
    %1460 = vmatpush1.msra.mxu0 0.0
    %1461 = vmatprep.subr.mxu0 0.0
    %1462 = vmatpush1.msra.mxu0 0.0
    %1463 = vmatprep.subr.mxu0 0.0
    %1464 = vmatpush1.msra.mxu0 0.0
    %1465 = vmatprep.subr.mxu0 0.0
    %1466 = vmatpush1.msra.mxu0 0.0
    %1467 = vmatprep.subr.mxu0 0.0
    %1468 = vmatpush1.msra.mxu0 0.0
    %1469 = vmatprep.subr.mxu0 0.0
    %1470 = vmatpush1.msra.mxu0 0.0
    %1471 = vmatprep.subr.mxu0 0.0
    %1472 = vmatpush1.msra.mxu0 0.0
    %1473 = vmatprep.subr.mxu0 0.0
    %1474 = vmatpush1.msra.mxu0 0.0
    %1475 = vmatprep.subr.mxu0 0.0
    %1476 = vmatpush1.msra.mxu0 0.0
    %1477 = vmatprep.subr.mxu0 0.0
    %1478 = vmatpush1.msra.mxu0 0.0
    %1479 = vmatprep.subr.mxu0 0.0
    %1480 = vmatpush1.msra.mxu0 0.0
    %1481 = vmatprep.subr.mxu0 0.0
    %1482 = vmatpush1.msra.mxu0 0.0
    %1483 = vmatprep.mubr.f32.mxu0 0.0
    %1484 = vmatmul.mubr.f32.gmra.mrb[0].mxu0 %v1343
    %v1485 = vpop.f32.mrb[0].mxu0
    %v1486 = vadd.f32 %v1415, %v1485
    %v1487 = vpop.f32.mrb[0].mxu0
    %v1488 = vadd.f32 %v1417, %v1487
    %1489 = vdwg.mxu0
    %v1490 = vmax.f32 %v1486, 0.0
    %v1491 = vmax.f32 %v1488, 0.0
    %v1492 = vld [vmem:[%s9] sm:$0xff]
    %v1493 = vld [vmem:[%s9 + $0x8] sm:$0xff]
    %v1494 = vld [vmem:[%s9 + $0x10] sm:$0xff]
    %v1495 = vld [vmem:[%s9 + $0x18] sm:$0xff]
    %v1496 = vld [vmem:[%s9 + $0x20] sm:$0xff]
    %v1497 = vld [vmem:[%s9 + $0x28] sm:$0xff]
    %v1498 = vld [vmem:[%s9 + $0x30] sm:$0xff]
    %v1499 = vld [vmem:[%s9 + $0x38] sm:$0xff]
    %v1500 = vld [vmem:[%s9 + $0x40] sm:$0xff]
    %v1501 = vld [vmem:[%s9 + $0x48] sm:$0xff]
    %v1502 = vld [vmem:[%s9 + $0x50] sm:$0xff]
    %v1503 = vld [vmem:[%s9 + $0x58] sm:$0xff]
    %v1504 = vld [vmem:[%s9 + $0x60] sm:$0xff]
    %v1505 = vld [vmem:[%s9 + $0x68] sm:$0xff]
    %v1506 = vld [vmem:[%s9 + $0x70] sm:$0xff]
    %v1507 = vld [vmem:[%s9 + $0x78] sm:$0xff]
    %v1508 = vld [vmem:[%s9 + $0x80] sm:$0xff]
    %v1509 = vld [vmem:[%s9 + $0x88] sm:$0xff]
    %v1510 = vld [vmem:[%s9 + $0x90] sm:$0xff]
    %v1511 = vld [vmem:[%s9 + $0x98] sm:$0xff]
    %v1512 = vld [vmem:[%s9 + $0xa0] sm:$0xff]
    %v1513 = vld [vmem:[%s9 + $0xa8] sm:$0xff]
    %v1514 = vld [vmem:[%s9 + $0xb0] sm:$0xff]
    %v1515 = vld [vmem:[%s9 + $0xb8] sm:$0xff]
    %v1516 = vld [vmem:[%s9 + $0xc0] sm:$0xff]
    %v1517 = vld [vmem:[%s9 + $0xc8] sm:$0xff]
    %v1518 = vld [vmem:[%s9 + $0xd0] sm:$0xff]
    %v1519 = vld [vmem:[%s9 + $0xd8] sm:$0xff]
    %v1520 = vld [vmem:[%s9 + $0xe0] sm:$0xff]
    %v1521 = vld [vmem:[%s9 + $0xe8] sm:$0xff]
    %v1522 = vld [vmem:[%s9 + $0xf0] sm:$0xff]
    %v1523 = vld [vmem:[%s9 + $0xf8] sm:$0xff]
    %v1524 = vld [vmem:[%s9 + $0x100] sm:$0xff]
    %v1525 = vld [vmem:[%s9 + $0x108] sm:$0xff]
    %v1526 = vld [vmem:[%s9 + $0x110] sm:$0xff]
    %v1527 = vld [vmem:[%s9 + $0x118] sm:$0xff]
    %v1528 = vld [vmem:[%s9 + $0x120] sm:$0xff]
    %v1529 = vld [vmem:[%s9 + $0x128] sm:$0xff]
    %v1530 = vld [vmem:[%s9 + $0x130] sm:$0xff]
    %v1531 = vld [vmem:[%s9 + $0x138] sm:$0xff]
    %v1532 = vld [vmem:[%s9 + $0x140] sm:$0xff]
    %v1533 = vld [vmem:[%s9 + $0x148] sm:$0xff]
    %v1534 = vld [vmem:[%s9 + $0x150] sm:$0xff]
    %v1535 = vld [vmem:[%s9 + $0x158] sm:$0xff]
    %v1536 = vld [vmem:[%s9 + $0x160] sm:$0xff]
    %v1537 = vld [vmem:[%s9 + $0x168] sm:$0xff]
    %v1538 = vld [vmem:[%s9 + $0x170] sm:$0xff]
    %v1539 = vld [vmem:[%s9 + $0x178] sm:$0xff]
    %v1540 = vld [vmem:[%s9 + $0x180] sm:$0xff]
    %v1541 = vld [vmem:[%s9 + $0x188] sm:$0xff]
    %v1542 = vld [vmem:[%s9 + $0x190] sm:$0xff]
    %v1543 = vld [vmem:[%s9 + $0x198] sm:$0xff]
    %v1544 = vld [vmem:[%s9 + $0x1a0] sm:$0xff]
    %v1545 = vld [vmem:[%s9 + $0x1a8] sm:$0xff]
    %v1546 = vld [vmem:[%s9 + $0x1b0] sm:$0xff]
    %v1547 = vld [vmem:[%s9 + $0x1b8] sm:$0xff]
    %v1548 = vld [vmem:[%s9 + $0x1c0] sm:$0xff]
    %v1549 = vld [vmem:[%s9 + $0x1c8] sm:$0xff]
    %v1550 = vld [vmem:[%s9 + $0x1d0] sm:$0xff]
    %v1551 = vld [vmem:[%s9 + $0x1d8] sm:$0xff]
    %v1552 = vld [vmem:[%s9 + $0x1e0] sm:$0xff]
    %v1553 = vld [vmem:[%s9 + $0x1e8] sm:$0xff]
    %v1554 = vld [vmem:[%s9 + $0x1f0] sm:$0xff]
    %v1555 = vld [vmem:[%s9 + $0x1f8] sm:$0xff]
    %v1556 = vld [vmem:[%s10] sm:$0x3]
    %v1558 = vlaneseq
    %v1559 = vshrl.u32 %v1558, 7
    %v1560 = vsub.s32 0, %v1559
    %v1561 = vrot.slane %v1556, %v1560
    %v1562 = vlaneseq
    %v1563 = vshrl.u32 %v1562, 7
    %v1564 = vsub.s32 1, %v1563
    %v1565 = vrot.slane %v1556, %v1564
    %1568 = vmatprep.subr.mxu0 %v1493
    %1569 = vmatpush1.msra.mxu0 %v1492
    %1570 = vmatprep.subr.mxu0 %v1495
    %1571 = vmatpush1.msra.mxu0 %v1494
    %1572 = vmatprep.subr.mxu0 %v1497
    %1573 = vmatpush1.msra.mxu0 %v1496
    %1574 = vmatprep.subr.mxu0 %v1499
    %1575 = vmatpush1.msra.mxu0 %v1498
    %1576 = vmatprep.subr.mxu0 %v1501
    %1577 = vmatpush1.msra.mxu0 %v1500
    %1578 = vmatprep.subr.mxu0 %v1503
    %1579 = vmatpush1.msra.mxu0 %v1502
    %1580 = vmatprep.subr.mxu0 %v1505
    %1581 = vmatpush1.msra.mxu0 %v1504
    %1582 = vmatprep.subr.mxu0 %v1507
    %1583 = vmatpush1.msra.mxu0 %v1506
    %1584 = vmatprep.subr.mxu0 %v1509
    %1585 = vmatpush1.msra.mxu0 %v1508
    %1586 = vmatprep.subr.mxu0 %v1511
    %1587 = vmatpush1.msra.mxu0 %v1510
    %1588 = vmatprep.subr.mxu0 %v1513
    %1589 = vmatpush1.msra.mxu0 %v1512
    %1590 = vmatprep.subr.mxu0 %v1515
    %1591 = vmatpush1.msra.mxu0 %v1514
    %1592 = vmatprep.subr.mxu0 %v1517
    %1593 = vmatpush1.msra.mxu0 %v1516
    %1594 = vmatprep.subr.mxu0 %v1519
    %1595 = vmatpush1.msra.mxu0 %v1518
    %1596 = vmatprep.subr.mxu0 %v1521
    %1597 = vmatpush1.msra.mxu0 %v1520
    %1598 = vmatprep.subr.mxu0 %v1523
    %1599 = vmatpush1.msra.mxu0 %v1522
    %1600 = vmatprep.subr.mxu0 %v1525
    %1601 = vmatpush1.msra.mxu0 %v1524
    %1602 = vmatprep.subr.mxu0 %v1527
    %1603 = vmatpush1.msra.mxu0 %v1526
    %1604 = vmatprep.subr.mxu0 %v1529
    %1605 = vmatpush1.msra.mxu0 %v1528
    %1606 = vmatprep.subr.mxu0 %v1531
    %1607 = vmatpush1.msra.mxu0 %v1530
    %1608 = vmatprep.subr.mxu0 %v1533
    %1609 = vmatpush1.msra.mxu0 %v1532
    %1610 = vmatprep.subr.mxu0 %v1535
    %1611 = vmatpush1.msra.mxu0 %v1534
    %1612 = vmatprep.subr.mxu0 %v1537
    %1613 = vmatpush1.msra.mxu0 %v1536
    %1614 = vmatprep.subr.mxu0 %v1539
    %1615 = vmatpush1.msra.mxu0 %v1538
    %1616 = vmatprep.subr.mxu0 %v1541
    %1617 = vmatpush1.msra.mxu0 %v1540
    %1618 = vmatprep.subr.mxu0 %v1543
    %1619 = vmatpush1.msra.mxu0 %v1542
    %1620 = vmatprep.subr.mxu0 %v1545
    %1621 = vmatpush1.msra.mxu0 %v1544
    %1622 = vmatprep.subr.mxu0 %v1547
    %1623 = vmatpush1.msra.mxu0 %v1546
    %1624 = vmatprep.subr.mxu0 %v1549
    %1625 = vmatpush1.msra.mxu0 %v1548
    %1626 = vmatprep.subr.mxu0 %v1551
    %1627 = vmatpush1.msra.mxu0 %v1550
    %1628 = vmatprep.subr.mxu0 %v1553
    %1629 = vmatpush1.msra.mxu0 %v1552
    %1630 = vmatprep.subr.mxu0 %v1555
    %1631 = vmatpush1.msra.mxu0 %v1554
    %1632 = vmatprep.mubr.f32.mxu0 %v1491
    %1633 = vmatmul.mubr.f32.gmra.mrb[0].mxu0 %v1490
    %v1634 = vpop.f32.mrb[0].mxu0
    %v1635 = vadd.f32 %v1561, %v1634
    %v1636 = vpop.f32.mrb[0].mxu0
    %v1637 = vadd.f32 %v1565, %v1636
    %1638 = vdwg.mxu0
    %v1639 = vmax.f32 %v1635, 0.0
    %v1640 = vmax.f32 %v1637, 0.0
    %v1641 = vld [vmem:[#allocation8] sm:$0xff]
    %v1642 = vld [vmem:[#allocation8 + $0x8] sm:$0xff]
    %v1643 = vld [vmem:[#allocation8 + $0x10] sm:$0xff]
    %v1644 = vld [vmem:[#allocation8 + $0x18] sm:$0xff]
    %v1645 = vld [vmem:[#allocation8 + $0x20] sm:$0xff]
    %v1646 = vld [vmem:[#allocation8 + $0x28] sm:$0xff]
    %v1647 = vld [vmem:[#allocation8 + $0x30] sm:$0xff]
    %v1648 = vld [vmem:[#allocation8 + $0x38] sm:$0xff]
    %v1649 = vld [vmem:[#allocation8 + $0x40] sm:$0xff]
    %v1650 = vld [vmem:[#allocation8 + $0x48] sm:$0xff]
    %v1651 = vld [vmem:[#allocation8 + $0x50] sm:$0xff]
    %v1652 = vld [vmem:[#allocation8 + $0x58] sm:$0xff]
    %v1653 = vld [vmem:[#allocation8 + $0x60] sm:$0xff]
    %v1654 = vld [vmem:[#allocation8 + $0x68] sm:$0xff]
    %v1655 = vld [vmem:[#allocation8 + $0x70] sm:$0xff]
    %v1656 = vld [vmem:[#allocation8 + $0x78] sm:$0xff]
    %v1657 = vld [vmem:[#allocation8 + $0x80] sm:$0xff]
    %v1658 = vld [vmem:[#allocation8 + $0x88] sm:$0xff]
    %v1659 = vld [vmem:[#allocation8 + $0x90] sm:$0xff]
    %v1660 = vld [vmem:[#allocation8 + $0x98] sm:$0xff]
    %v1661 = vld [vmem:[#allocation8 + $0xa0] sm:$0xff]
    %v1662 = vld [vmem:[#allocation8 + $0xa8] sm:$0xff]
    %v1663 = vld [vmem:[#allocation8 + $0xb0] sm:$0xff]
    %v1664 = vld [vmem:[#allocation8 + $0xb8] sm:$0xff]
    %v1665 = vld [vmem:[#allocation8 + $0xc0] sm:$0xff]
    %v1666 = vld [vmem:[#allocation8 + $0xc8] sm:$0xff]
    %v1667 = vld [vmem:[#allocation8 + $0xd0] sm:$0xff]
    %v1668 = vld [vmem:[#allocation8 + $0xd8] sm:$0xff]
    %v1669 = vld [vmem:[#allocation8 + $0xe0] sm:$0xff]
    %v1670 = vld [vmem:[#allocation8 + $0xe8] sm:$0xff]
    %v1671 = vld [vmem:[#allocation8 + $0xf0] sm:$0xff]
    %v1672 = vld [vmem:[#allocation8 + $0xf8] sm:$0xff]
    %v1673 = vld [vmem:[#allocation8 + $0x100] sm:$0xff]
    %v1674 = vld [vmem:[#allocation8 + $0x108] sm:$0xff]
    %v1675 = vld [vmem:[#allocation8 + $0x110] sm:$0xff]
    %v1676 = vld [vmem:[#allocation8 + $0x118] sm:$0xff]
    %v1677 = vld [vmem:[#allocation8 + $0x120] sm:$0xff]
    %v1678 = vld [vmem:[#allocation8 + $0x128] sm:$0xff]
    %v1679 = vld [vmem:[#allocation8 + $0x130] sm:$0xff]
    %v1680 = vld [vmem:[#allocation8 + $0x138] sm:$0xff]
    %v1681 = vld [vmem:[#allocation8 + $0x140] sm:$0xff]
    %v1682 = vld [vmem:[#allocation8 + $0x148] sm:$0xff]
    %v1683 = vld [vmem:[#allocation8 + $0x150] sm:$0xff]
    %v1684 = vld [vmem:[#allocation8 + $0x158] sm:$0xff]
    %v1685 = vld [vmem:[#allocation8 + $0x160] sm:$0xff]
    %v1686 = vld [vmem:[#allocation8 + $0x168] sm:$0xff]
    %v1687 = vld [vmem:[#allocation8 + $0x170] sm:$0xff]
    %v1688 = vld [vmem:[#allocation8 + $0x178] sm:$0xff]
    %v1689 = vld [vmem:[#allocation8 + $0x180] sm:$0xff]
    %v1690 = vld [vmem:[#allocation8 + $0x188] sm:$0xff]
    %v1691 = vld [vmem:[#allocation8 + $0x190] sm:$0xff]
    %v1692 = vld [vmem:[#allocation8 + $0x198] sm:$0xff]
    %v1693 = vld [vmem:[#allocation8 + $0x1a0] sm:$0xff]
    %v1694 = vld [vmem:[#allocation8 + $0x1a8] sm:$0xff]
    %v1695 = vld [vmem:[#allocation8 + $0x1b0] sm:$0xff]
    %v1696 = vld [vmem:[#allocation8 + $0x1b8] sm:$0xff]
    %v1697 = vld [vmem:[#allocation8 + $0x1c0] sm:$0xff]
    %v1698 = vld [vmem:[#allocation8 + $0x1c8] sm:$0xff]
    %v1699 = vld [vmem:[#allocation8 + $0x1d0] sm:$0xff]
    %v1700 = vld [vmem:[#allocation8 + $0x1d8] sm:$0xff]
    %v1701 = vld [vmem:[#allocation8 + $0x1e0] sm:$0xff]
    %v1702 = vld [vmem:[#allocation8 + $0x1e8] sm:$0xff]
    %v1703 = vld [vmem:[#allocation8 + $0x1f0] sm:$0xff]
    %v1704 = vld [vmem:[#allocation8 + $0x1f8] sm:$0xff]
    %v1705 = vld [vmem:[%s12] sm:$0x3]
    %v1707 = vlaneseq
    %v1708 = vshrl.u32 %v1707, 7
    %v1709 = vsub.s32 0, %v1708
    %v1710 = vrot.slane %v1705, %v1709
    %v1711 = vlaneseq
    %v1712 = vshrl.u32 %v1711, 7
    %v1713 = vsub.s32 1, %v1712
    %v1714 = vrot.slane %v1705, %v1713
    %1717 = vmatprep.subr.mxu0 %v1642
    %1718 = vmatpush1.msra.mxu0 %v1641
    %1719 = vmatprep.subr.mxu0 %v1644
    %1720 = vmatpush1.msra.mxu0 %v1643
    %1721 = vmatprep.subr.mxu0 %v1646
    %1722 = vmatpush1.msra.mxu0 %v1645
    %1723 = vmatprep.subr.mxu0 %v1648
    %1724 = vmatpush1.msra.mxu0 %v1647
    %1725 = vmatprep.subr.mxu0 %v1650
    %1726 = vmatpush1.msra.mxu0 %v1649
    %1727 = vmatprep.subr.mxu0 %v1652
    %1728 = vmatpush1.msra.mxu0 %v1651
    %1729 = vmatprep.subr.mxu0 %v1654
    %1730 = vmatpush1.msra.mxu0 %v1653
    %1731 = vmatprep.subr.mxu0 %v1656
    %1732 = vmatpush1.msra.mxu0 %v1655
    %1733 = vmatprep.subr.mxu0 %v1658
    %1734 = vmatpush1.msra.mxu0 %v1657
    %1735 = vmatprep.subr.mxu0 %v1660
    %1736 = vmatpush1.msra.mxu0 %v1659
    %1737 = vmatprep.subr.mxu0 %v1662
    %1738 = vmatpush1.msra.mxu0 %v1661
    %1739 = vmatprep.subr.mxu0 %v1664
    %1740 = vmatpush1.msra.mxu0 %v1663
    %1741 = vmatprep.subr.mxu0 %v1666
    %1742 = vmatpush1.msra.mxu0 %v1665
    %1743 = vmatprep.subr.mxu0 %v1668
    %1744 = vmatpush1.msra.mxu0 %v1667
    %1745 = vmatprep.subr.mxu0 %v1670
    %1746 = vmatpush1.msra.mxu0 %v1669
    %1747 = vmatprep.subr.mxu0 %v1672
    %1748 = vmatpush1.msra.mxu0 %v1671
    %1749 = vmatprep.subr.mxu0 %v1674
    %1750 = vmatpush1.msra.mxu0 %v1673
    %1751 = vmatprep.subr.mxu0 %v1676
    %1752 = vmatpush1.msra.mxu0 %v1675
    %1753 = vmatprep.subr.mxu0 %v1678
    %1754 = vmatpush1.msra.mxu0 %v1677
    %1755 = vmatprep.subr.mxu0 %v1680
    %1756 = vmatpush1.msra.mxu0 %v1679
    %1757 = vmatprep.subr.mxu0 %v1682
    %1758 = vmatpush1.msra.mxu0 %v1681
    %1759 = vmatprep.subr.mxu0 %v1684
    %1760 = vmatpush1.msra.mxu0 %v1683
    %1761 = vmatprep.subr.mxu0 %v1686
    %1762 = vmatpush1.msra.mxu0 %v1685
    %1763 = vmatprep.subr.mxu0 %v1688
    %1764 = vmatpush1.msra.mxu0 %v1687
    %1765 = vmatprep.subr.mxu0 %v1690
    %1766 = vmatpush1.msra.mxu0 %v1689
    %1767 = vmatprep.subr.mxu0 %v1692
    %1768 = vmatpush1.msra.mxu0 %v1691
    %1769 = vmatprep.subr.mxu0 %v1694
    %1770 = vmatpush1.msra.mxu0 %v1693
    %1771 = vmatprep.subr.mxu0 %v1696
    %1772 = vmatpush1.msra.mxu0 %v1695
    %1773 = vmatprep.subr.mxu0 %v1698
    %1774 = vmatpush1.msra.mxu0 %v1697
    %1775 = vmatprep.subr.mxu0 %v1700
    %1776 = vmatpush1.msra.mxu0 %v1699
    %1777 = vmatprep.subr.mxu0 %v1702
    %1778 = vmatpush1.msra.mxu0 %v1701
    %1779 = vmatprep.subr.mxu0 %v1704
    %1780 = vmatpush1.msra.mxu0 %v1703
    %1781 = vmatprep.mubr.f32.mxu0 %v1640
    %1782 = vmatmul.mubr.f32.gmra.mrb[0].mxu0 %v1639
    %v1783 = vpop.f32.mrb[0].mxu0
    %v1784 = vadd.f32 %v1710, %v1783
    %v1785 = vpop.f32.mrb[0].mxu0
    %v1786 = vadd.f32 %v1714, %v1785
    %1787 = vdwg.mxu0
    %v1790 = vcombine.low %v1784, %v1786
    %v1792 = vunpack.c.l.s4 1983009808
    %v1793 = vunpack.c.0.s8 %v1792
    %v1794 = vlaneseq
    %v1795 = vshrl.u32 %v1794, 7
    %v1796 = vsub.s32 %v1793, %v1795
    %v1797 = vrot.slane %v1790, %v1796
    %1799 = vst [vmem:[%s14] sm:$0xf] %v1797
    %v1800 = vmax.f32 %v1784, %v1786
    %v1801 = vsub.f32 %v1784, %v1800
    %v1802 = vmul.f32 %v1801, 1.442695
    %v1803 = vpow.pop %v1802
    %v1804 = vsub.f32 %v1786, %v1800
    %v1805 = vmul.f32 %v1804, 1.442695
    %v1806 = vpow.pop %v1805
    %v1807 = vadd.f32 %v1803, %v1806
    %v1808 = vrcp.pop %v1807
    %v1809 = vlaneseq
    %v1810 = vand.u32 %v1809, 127
    %vm1811 = vcmp.lt.s32.totalorder %v1810, 100
    %v1812 = vmul.f32 %v1803, %v1808
    %v1813 = vsel %vm1811, %v1812, -1.0
    %vm1814 = vcmask 1041408
    %v1815 = vsel %vm1814, %v1813, -inf
    %1816 = vmax.xlane.f32.xlu0 %v1815
    %v1817 = vpop.xlane.xlu0 %1816
    %vm1818 = vcmp.ge.f32.partialorder %v1813, %v1817
    %v1819 = vsel %vm1818, %v1810, 128
    %v1820 = vsel %vm1814, %v1819, 2147483647
    %v1821 = vand.u32 %v1820, 65535
    %v1822 = vshra.s32 %v1820, 16
    %v1823 = vcvt.s32.f32 %v1821
    %v1824 = vcvt.s32.f32 %v1822
    %1825 = vmin.xlane.f32.xlu0 %v1824
    %v1826 = vpop.xlane.xlu0 %1825
    %vm1827 = vcmp.eq.f32.partialorder %v1824, %v1826
    %v1828 = vsel %vm1827, %v1823, inf
    %1829 = vmin.xlane.f32.xlu0 %v1828
    %v1830 = vpop.xlane.xlu0 %1829
    %v1831 = vcvt.f32.s32 %v1830
    %v1832 = vcvt.f32.s32 %v1826
    %v1833 = vshll.u32 %v1832, 16
    %v1834 = vadd.s32 %v1833, %v1831
    %vm1835 = vcmp.eq.s32.totalorder %v1810, %v1834
    %v1836 = vmul.f32 %v1806, %v1808
    %v1837 = vsel %vm1811, %v1836, -1.0
    %v1838 = vsel %vm1814, %v1837, -inf
    %1839 = vmax.xlane.f32.xlu0 %v1838
    %v1840 = vpop.xlane.xlu0 %1839
    %vm1841 = vcmp.ge.f32.partialorder %v1837, %v1840
    %v1842 = vsel %vm1841, %v1810, 128
    %v1843 = vsel %vm1814, %v1842, 2147483647
    %v1844 = vand.u32 %v1843, 65535
    %v1845 = vshra.s32 %v1843, 16
    %v1846 = vcvt.s32.f32 %v1844
    %v1847 = vcvt.s32.f32 %v1845
    %1848 = vmin.xlane.f32.xlu0 %v1847
    %v1849 = vpop.xlane.xlu0 %1848
    %vm1850 = vcmp.eq.f32.partialorder %v1847, %v1849
    %v1851 = vsel %vm1850, %v1846, inf
    %1852 = vmin.xlane.f32.xlu0 %v1851
    %v1853 = vpop.xlane.xlu0 %1852
    %v1854 = vcvt.f32.s32 %v1853
    %v1855 = vcvt.f32.s32 %v1849
    %v1856 = vshll.u32 %v1855, 16
    %v1857 = vadd.s32 %v1856, %v1854
    %vm1858 = vcmp.eq.s32.totalorder %v1810, %v1857
    %vm1859 = vmor %vm1835, %vm1858
    %v1860 = vsel %vm1859, 1.0, 0.0
    %1861 = vst [vmem:[#allocation9] sm:$0x3] %v1860
    // Predicated region
    $region66: #{actor_forward.1} parent=1 // pred_check
      _
    $region67: #{actor_forward.1} parent=1 // pred_check_branch
      %1863 = sbr.rel (0) target = $region69
    $region68: #{actor_forward.1} parent=1 // pred_region
      %s1865 = ssub.s32 32, 32
      %1866 = vsyncadd [#allocation5], %s1865
      %s1868 = sshll.u32 [#allocation9], 4
      %s1869 = int_to_ptr.vmem [resolvable:$true] %s1868
      %1871 = dma.vmem_to_hbm [thread:$0]  %s1869, 32, %s13, [#allocation5]
    $region69: #{actor_forward.1} parent=1 // pred_fallthru
      _
    // Predicated region
    $region70: #{actor_forward.1} parent=1 // pred_check
      _
    $region71: #{actor_forward.1} parent=1 // pred_check_branch
      %1873 = sbr.rel (0) target = $region73
    $region72: #{actor_forward.1} parent=1 // pred_region
      _
    $region73: #{actor_forward.1} parent=1 // pred_fallthru
      _
    // Predicated region
    $region74: #{actor_forward.1} parent=1 // pred_check
      _
    $region75: #{actor_forward.1} parent=1 // pred_check_branch
      %1875 = sbr.rel (0) target = $region77
    $region76: #{actor_forward.1} parent=1 // pred_region
      %1876 = dma.done [#allocation5], 32
    $region77: #{actor_forward.1} parent=1 // pred_fallthru
      _
    // Predicated region
    $region78: #{actor_forward.1} parent=1 // pred_check
      _
    $region79: #{actor_forward.1} parent=1 // pred_check_branch
      %1878 = sbr.rel (0) target = $region81
    $region80: #{actor_forward.1} parent=1 // pred_region
      _
    $region81: #{actor_forward.1} parent=1 // pred_fallthru
      _
    %1879 = vsyncpa [#allocation4], 1
    %1880 = vsyncpa [#allocation7], 1
    %1881 = vsyncpa [#allocation5], 1

</llo_original>
